<compile_context>
chip_gen: v7x
topology: tpu7x:2x2x1
jax: 0.10.0
libtpu: 0.0.40
codegen_flags: <defaults>
</compile_context>

<pallas_src>
import functools
import math

import jax
import jax.numpy as jnp
from jax import lax
from jax.experimental import pallas as pl
from jax.experimental.pallas import tpu as pltpu


# ------------------------------ kernel ---------------------------------------


def _layernorm(x, w, b, eps=1e-5):
    mu = jnp.mean(x, axis=-1, keepdims=True)
    var = jnp.mean((x - mu) ** 2, axis=-1, keepdims=True)
    return (x - mu) * lax.rsqrt(var + eps) * w + b


def rope_block_kernel(
    x_ref,        # (Bt, S, d_model)                 VMEM
    wqkv_ref,     # (d_model+1, 2*(dq+dkv)+dkv)      VMEM  [W ; bias row]
    rope_ref,     # (Bt*S, 2*(dq+dkv))               VMEM  [cos | sin], q-part pre-scaled
    ln_ref,       # (4, d_model)                     VMEM  [ln1_w; ln1_b; ln2_w; ln2_b]
    wup_ref,      # (d_model+1, d_ff)                VMEM  [W ; bias row]
    wgl_ref,      # (d_ff+1, 2*d_ff)                 VMEM  [gate|lin ; bias row]
    wdown_ref,    # (d_ff+1, d_model)                VMEM  [W ; bias row]
    beta_ref,     # (1, 1)                           SMEM scalar
    o_ref,        # (Bt, S, d_model)
    *, num_q_heads, num_kv_heads, head_dim,
):
    Bt, S, d_model = x_ref.shape
    D = head_dim
    Hq, Hkv = num_q_heads, num_kv_heads
    G = Hq // Hkv
    dq, dkv = Hq * D, Hkv * D
    dqk = dq + dkv

    x = x_ref[...].reshape(Bt * S, d_model)

    # ---- pre-LN + fused {q, k, rot_half(q), rot_half(k), v} projection -------
    xn = _layernorm(x, ln_ref[0], ln_ref[1])
    qkvx = (jnp.dot(xn, wqkv_ref[:d_model, :], preferred_element_type=jnp.float32)
            + wqkv_ref[d_model])

    # ---- RoPE applied once across all q/k heads (1/sqrt(D) folded into cos/sin_q)
    qk_r = (qkvx[:, :dqk] * rope_ref[:, :dqk]
            + qkvx[:, dqk:2 * dqk] * rope_ref[:, dqk:])
    v = qkvx[:, 2 * dqk:]

    # ---- head-batched causal attention (GQA via shared kv slices) ------------
    qs, ks, vs = [], [], []
    for b in range(Bt):
        r = slice(b * S, (b + 1) * S)
        for h in range(Hq):
            kv = h // G
            qs.append(qk_r[r, h * D:(h + 1) * D])
            ks.append(qk_r[r, dq + kv * D:dq + (kv + 1) * D])
            vs.append(v[r, kv * D:(kv + 1) * D])
    qh = jnp.stack(qs)                       # (Bt*Hq, S, D)
    kh = jnp.stack(ks)                       # (Bt*Hq, S, D)
    vh = jnp.stack(vs)                       # (Bt*Hq, S, D)

    s = jnp.einsum("nqd,nkd->nqk", qh, kh, preferred_element_type=jnp.float32)
    row = lax.broadcasted_iota(jnp.int32, (S, S), 0)
    col = lax.broadcasted_iota(jnp.int32, (S, S), 1)
    s = jnp.where((row >= col)[None], s, jnp.float32(-1e30))  # finite mask fill
    m = jnp.max(s, axis=-1, keepdims=True)
    e = jnp.exp(s - m)
    p = e * pl.reciprocal(jnp.sum(e, axis=-1, keepdims=True), approx=True)
    # TODO(synk): training-mode attention dropout (nn.Dropout) not implemented;
    # it is the identity at p=0.0 / eval, which is what we model here.
    o = jnp.einsum("nqk,nkd->nqd", p, vh, preferred_element_type=jnp.float32)

    attn = jnp.concatenate(
        [jnp.concatenate([o[b * Hq + h] for h in range(Hq)], axis=-1)
         for b in range(Bt)], axis=0)        # (Bt*S, d_model)

    # ---- residual 1 + post-LN + up_proj + SwiGLU + down_proj + residual 2 ----
    h1 = x + attn
    h1n = _layernorm(h1, ln_ref[2], ln_ref[3])

    d_ff = wup_ref.shape[1]
    up = (jnp.dot(h1n, wup_ref[:d_model, :], preferred_element_type=jnp.float32)
          + wup_ref[d_model])
    gl = (jnp.dot(up, wgl_ref[:d_ff, :], preferred_element_type=jnp.float32)
          + wgl_ref[d_ff])
    gate, lin = gl[:, :d_ff], gl[:, d_ff:]
    beta = beta_ref[0, 0]
    sw = gate * jax.nn.sigmoid(beta * gate) * lin
    down = (jnp.dot(sw, wdown_ref[:d_ff, :], preferred_element_type=jnp.float32)
            + wdown_ref[d_ff])

    o_ref[...] = (h1 + down).reshape(Bt, S, d_model).astype(o_ref.dtype)


# -------------------------- packing (done once) -------------------------------


def _rot_half_cols(w, n_heads, head_dim):
    """Per-head column permutation+negation so x @ _rot_half_cols(W) == rotate_half(x @ W)."""
    lead = w.shape[:-1]
    w3 = w.reshape(*lead, n_heads, head_dim)
    h = head_dim // 2
    w3r = jnp.concatenate([-w3[..., h:], w3[..., :h]], axis=-1)
    return w3r.reshape(*lead, n_heads * head_dim)


def pack_block_params(params, *, seq_len, num_q_heads, num_kv_heads, head_dim,
                      batch_tile):
    """Precompute RoPE cache + pack the 21 small parameters into 7 operands."""
    D = head_dim
    Hq, Hkv = num_q_heads, num_kv_heads

    # RoPE cache (matches RotaryPositionalEmbeddings: repeat_interleave by 2),
    # tiled across heads and the batch tile, with 1/sqrt(D) folded into the q half.
    inv_freq = 1.0 / (10000.0 ** (jnp.arange(0, D, 2, dtype=jnp.float32) / D))
    t = jnp.arange(seq_len, dtype=jnp.float32)
    emb = jnp.repeat(jnp.einsum("i,j->ij", t, inv_freq), 2, axis=-1)      # (S, D)
    cos, sin = jnp.cos(emb), jnp.sin(emb)
    scale = 1.0 / math.sqrt(float(D))
    cos_qk = jnp.concatenate([jnp.tile(cos, (1, Hq)) * scale,
                              jnp.tile(cos, (1, Hkv))], axis=-1)
    sin_qk = jnp.concatenate([jnp.tile(sin, (1, Hq)) * scale,
                              jnp.tile(sin, (1, Hkv))], axis=-1)
    rope = jnp.tile(jnp.concatenate([cos_qk, sin_qk], axis=-1), (batch_tile, 1))

    # Fused qkv projection with extra pre-rotated q/k columns; bias as last row.
    wq, wk, wv = params["wq"], params["wk"], params["wv"]
    bq, bk, bv = params["bq"], params["bk"], params["bv"]
    w_qkvx = jnp.concatenate(
        [wq, wk, _rot_half_cols(wq, Hq, D), _rot_half_cols(wk, Hkv, D), wv], axis=-1)
    b_qkvx = jnp.concatenate(
        [bq, bk, _rot_half_cols(bq, Hq, D), _rot_half_cols(bk, Hkv, D), bv], axis=-1)
    wqkv = jnp.concatenate([w_qkvx, b_qkvx], axis=0)

    ln = jnp.concatenate(
        [params["ln1_w"], params["ln1_b"], params["ln2_w"], params["ln2_b"]], axis=0)

    wup = jnp.concatenate([params["w_up"], params["b_up"]], axis=0)
    wgl = jnp.concatenate(
        [jnp.concatenate([params["w_gate"], params["w_lin"]], axis=-1),
         jnp.concatenate([params["b_gate"], params["b_lin"]], axis=-1)], axis=0)
    wdown = jnp.concatenate([params["w_down"], params["b_down"]], axis=0)

    return {
        "batch_tile": int(batch_tile),
        "wqkv": wqkv, "rope": rope, "ln": ln,
        "wup": wup, "wgl": wgl, "wdown": wdown,
        "beta": params["beta"].reshape(1, 1).astype(jnp.float32),
    }


# ------------------------------ wrapper ---------------------------------------


def rope_model_block(x, packed, *, num_q_heads, num_kv_heads, head_dim):
    B, S, d_model = x.shape
    Bt = packed["batch_tile"]
    assert B % Bt == 0

    kernel = functools.partial(
        rope_block_kernel,
        num_q_heads=num_q_heads, num_kv_heads=num_kv_heads, head_dim=head_dim)

    def const2d(w):
        # Whole-array, grid-invariant weight block. (When scaling d_model/d_ff
        # toward v7x's 64 MiB VMEM with a multi-step grid, these are candidates
        # for single-buffering via pipeline_mode.)
        return pl.BlockSpec(w.shape, lambda b: (0, 0))

    in_specs = [
        pl.BlockSpec((Bt, S, d_model), lambda b: (b, 0, 0)),
        const2d(packed["wqkv"]),
        const2d(packed["rope"]),
        const2d(packed["ln"]),
        const2d(packed["wup"]),
        const2d(packed["wgl"]),
        const2d(packed["wdown"]),
        pl.BlockSpec(memory_space=pltpu.MemorySpace.SMEM),   # beta scalar
    ]

    return pl.pallas_call(
        kernel,
        out_shape=jax.ShapeDtypeStruct((B, S, d_model), x.dtype),
        grid_spec=pltpu.PrefetchScalarGridSpec(
            num_scalar_prefetch=0,
            grid=(B // Bt,),                    # Bt=B -> single grid step
            in_specs=in_specs,
            out_specs=pl.BlockSpec((Bt, S, d_model), lambda b: (b, 0, 0)),
        ),
        compiler_params=pltpu.CompilerParams(
            dimension_semantics=("parallel",)),
    )(x, packed["wqkv"], packed["rope"], packed["ln"], packed["wup"],
      packed["wgl"], packed["wdown"], packed["beta"])


# --------------------------- pure-JAX reference -------------------------------


def reference_block(x, params, *, num_q_heads, num_kv_heads, head_dim):
    B, S, d_model = x.shape
    num_q_per_kv = num_q_heads // num_kv_heads

    def ln(z, w, b, eps=1e-5):
        mu = jnp.mean(z, axis=-1, keepdims=True)
        var = jnp.mean((z - mu) ** 2, axis=-1, keepdims=True)
        return (z - mu) / jnp.sqrt(var + eps) * w + b

    def rot_half(z):
        h = z.shape[-1] // 2
        return jnp.concatenate([-z[..., h:], z[..., :h]], axis=-1)

    inv_freq = 1.0 / (10000.0 ** (jnp.arange(0, head_dim, 2, dtype=jnp.float32) / head_dim))
    t = jnp.arange(S, dtype=jnp.float32)
    emb = jnp.repeat(jnp.einsum("i,j->ij", t, inv_freq), 2, axis=-1)
    cos, sin = jnp.cos(emb), jnp.sin(emb)                   # (S, D)

    skip = x
    xn = ln(x, params["ln1_w"], params["ln1_b"])
    q = xn @ params["wq"] + params["bq"]
    k = xn @ params["wk"] + params["bk"]
    v = xn @ params["wv"] + params["bv"]
    q = q.reshape(B, S, num_q_heads, head_dim).transpose(0, 2, 1, 3)
    k = k.reshape(B, S, num_kv_heads, head_dim).transpose(0, 2, 1, 3)
    v = v.reshape(B, S, num_kv_heads, head_dim).transpose(0, 2, 1, 3)
    if num_q_heads != num_kv_heads:
        k = jnp.repeat(k, num_q_per_kv, axis=1)
        v = jnp.repeat(v, num_q_per_kv, axis=1)
    qr = q * cos + rot_half(q) * sin
    kr = k * cos + rot_half(k) * sin
    scores = (qr @ jnp.swapaxes(kr, -1, -2)) * (1.0 / math.sqrt(float(head_dim)))
    causal = jnp.tril(jnp.ones((S, S), dtype=bool))
    scores = jnp.where(causal, scores, -jnp.inf)
    w = jax.nn.softmax(scores, axis=-1)
    attn = (w @ v).transpose(0, 2, 1, 3).reshape(B, S, d_model)
    h1 = skip + attn

    h1n = ln(h1, params["ln2_w"], params["ln2_b"])
    up = h1n @ params["w_up"] + params["b_up"]
    gate = up @ params["w_gate"] + params["b_gate"]
    lin = up @ params["w_lin"] + params["b_lin"]
    sw = gate * jax.nn.sigmoid(params["beta"][0, 0] * gate) * lin
    down = sw @ params["w_down"] + params["b_down"]
    return h1 + down


# --------------------------------- main ---------------------------------------


def make_params(key, d_model, head_dim, num_q_heads, num_kv_heads, proj_fac):
    d_ff = d_model * proj_fac
    ks = jax.random.split(key, 16)
    s = 0.05

    def w(k, shape):
        return jax.random.normal(k, shape, dtype=jnp.float32) * s

    return {
        "ln1_w": jnp.ones((1, d_model), jnp.float32),
        "ln1_b": jnp.zeros((1, d_model), jnp.float32),
        "wq": w(ks[0], (d_model, head_dim * num_q_heads)),
        "bq": w(ks[1], (1, head_dim * num_q_heads)),
        "wk": w(ks[2], (d_model, head_dim * num_kv_heads)),
        "bk": w(ks[3], (1, head_dim * num_kv_heads)),
        "wv": w(ks[4], (d_model, head_dim * num_kv_heads)),
        "bv": w(ks[5], (1, head_dim * num_kv_heads)),
        "ln2_w": jnp.ones((1, d_model), jnp.float32),
        "ln2_b": jnp.zeros((1, d_model), jnp.float32),
        "w_up": w(ks[6], (d_model, d_ff)),
        "b_up": w(ks[7], (1, d_ff)),
        "w_gate": w(ks[8], (d_ff, d_ff)),
        "b_gate": w(ks[9], (1, d_ff)),
        "w_lin": w(ks[10], (d_ff, d_ff)),
        "b_lin": w(ks[11], (1, d_ff)),
        "beta": jnp.ones((1, 1), jnp.float32),
        "w_down": w(ks[12], (d_ff, d_model)),
        "b_down": w(ks[13], (1, d_model)),
    }


if __name__ == "__main__":
    # Small shapes consistent with the module: seq_len=8, d_model=32,
    # head_dim=8, num_q_heads=4, num_kv_heads=2 (GQA), dropout=0.0, proj_fac=4.
    B, S, d_model = 2, 8, 32
    num_q_heads, num_kv_heads = 4, 2
    head_dim = d_model // num_q_heads
    proj_fac = 4

    key = jax.random.PRNGKey(0)
    kx, kp = jax.random.split(key)
    x = jax.random.normal(kx, (B, S, d_model), dtype=jnp.float32)
    params = make_params(kp, d_model, head_dim, num_q_heads, num_kv_heads, proj_fac)

    # Pack / precompute once (RoPE cache, fused + pre-rotated weights, etc.).
    packed = pack_block_params(
        params, seq_len=S, num_q_heads=num_q_heads, num_kv_heads=num_kv_heads,
        head_dim=head_dim, batch_tile=B)
    packed = {k: (jax.block_until_ready(v) if isinstance(v, jax.Array) else v)
              for k, v in packed.items()}

    out = rope_model_block(
        x, packed,
        num_q_heads=num_q_heads, num_kv_heads=num_kv_heads, head_dim=head_dim)
    out = jax.block_until_ready(out)

    ref = reference_block(
        x, params,
        num_q_heads=num_q_heads, num_kv_heads=num_kv_heads, head_dim=head_dim)
    ref = jax.block_until_ready(ref)

    assert out.shape == (B, S, d_model)
    assert bool(jnp.all(jnp.isfinite(out)))
    assert bool(jnp.allclose(out, ref, rtol=1e-3, atol=1e-3)), "mismatch vs reference"
    print("KERNEL_OK")
</pallas_src>

<mosaic_0001>
module attributes {stable_mosaic.version = 11 : i64} {
  func.func @rope_block_kernel(%arg0: i32, %arg1: memref<2x8x32xf32, #tpu.memory_space<vmem>>, %arg2: memref<33x112xf32, #tpu.memory_space<vmem>>, %arg3: memref<16x96xf32, #tpu.memory_space<vmem>>, %arg4: memref<4x32xf32, #tpu.memory_space<vmem>>, %arg5: memref<33x128xf32, #tpu.memory_space<vmem>>, %arg6: memref<129x256xf32, #tpu.memory_space<vmem>>, %arg7: memref<129x32xf32, #tpu.memory_space<vmem>>, %arg8: memref<1x1xf32, #tpu.memory_space<smem>>, %arg9: memref<2x8x32xf32, #tpu.memory_space<vmem>>) attributes {dimension_semantics = [#tpu.dimension_semantics<parallel>], iteration_bounds = array<i64: 1>, scalar_prefetch = 0 : i64, scratch_operands = 0 : i64, tpu.core_type = #tpu.core_type<tc>, window_params = [{transform_indices = @transform_0, window_bounds = array<i64: 2, 8, 32>}, {pipeline_mode = #tpu.pipeline_mode<synchronous>, transform_indices = @transform_1, window_bounds = array<i64: 33, 112>}, {pipeline_mode = #tpu.pipeline_mode<synchronous>, transform_indices = @transform_2, window_bounds = array<i64: 16, 96>}, {pipeline_mode = #tpu.pipeline_mode<synchronous>, transform_indices = @transform_3, window_bounds = array<i64: 4, 32>}, {pipeline_mode = #tpu.pipeline_mode<synchronous>, transform_indices = @transform_4, window_bounds = array<i64: 33, 128>}, {pipeline_mode = #tpu.pipeline_mode<synchronous>, transform_indices = @transform_5, window_bounds = array<i64: 129, 256>}, {pipeline_mode = #tpu.pipeline_mode<synchronous>, transform_indices = @transform_6, window_bounds = array<i64: 129, 32>}, {transform_indices = @transform_7, window_bounds = array<i64: 1, 1>}, {transform_indices = @transform_8, window_bounds = array<i64: 2, 8, 32>}]} {
    %c0 = arith.constant 0 : index
    %c0_0 = arith.constant 0 : index
    %c0_1 = arith.constant 0 : index
    %0 = vector.load %arg1[%c0, %c0_0, %c0_1] : memref<2x8x32xf32, #tpu.memory_space<vmem>>, vector<2x8x32xf32>
    %1 = vector.shape_cast %0 : vector<2x8x32xf32> to vector<16x32xf32>
    %c0_2 = arith.constant 0 : index
    %c0_3 = arith.constant 0 : index
    %2 = vector.load %arg4[%c0_2, %c0_3] : memref<4x32xf32, #tpu.memory_space<vmem>>, vector<1x32xf32>
    %3 = vector.shape_cast %2 : vector<1x32xf32> to vector<32xf32>
    %c1 = arith.constant 1 : index
    %c0_4 = arith.constant 0 : index
    %4 = vector.load %arg4[%c1, %c0_4] : memref<4x32xf32, #tpu.memory_space<vmem>>, vector<1x32xf32>
    %5 = vector.shape_cast %4 : vector<1x32xf32> to vector<32xf32>
    %cst = arith.constant dense<0.000000e+00> : vector<16xf32>
    %6 = vector.multi_reduction <add>, %1, %cst [1] : vector<16x32xf32> to vector<16xf32>
    %7 = vector.shape_cast %6 : vector<16xf32> to vector<16x1xf32>
    %cst_5 = arith.constant 3.200000e+01 : f32
    %8 = vector.broadcast %cst_5 : f32 to vector<16x1xf32>
    %9 = arith.divf %7, %8 : vector<16x1xf32>
    %10 = vector.broadcast %9 : vector<16x1xf32> to vector<16x32xf32>
    %11 = arith.subf %1, %10 : vector<16x32xf32>
    %12 = arith.mulf %11, %11 : vector<16x32xf32>
    %cst_6 = arith.constant dense<0.000000e+00> : vector<16xf32>
    %13 = vector.multi_reduction <add>, %12, %cst_6 [1] : vector<16x32xf32> to vector<16xf32>
    %14 = vector.shape_cast %13 : vector<16xf32> to vector<16x1xf32>
    %cst_7 = arith.constant 3.200000e+01 : f32
    %15 = vector.broadcast %cst_7 : f32 to vector<16x1xf32>
    %16 = arith.divf %14, %15 : vector<16x1xf32>
    %17 = vector.broadcast %9 : vector<16x1xf32> to vector<16x32xf32>
    %18 = arith.subf %1, %17 : vector<16x32xf32>
    %cst_8 = arith.constant 9.99999974E-6 : f32
    %19 = vector.broadcast %cst_8 : f32 to vector<16x1xf32>
    %20 = arith.addf %16, %19 : vector<16x1xf32>
    %21 = math.rsqrt %20 : vector<16x1xf32>
    %22 = vector.broadcast %21 : vector<16x1xf32> to vector<16x32xf32>
    %23 = arith.mulf %18, %22 : vector<16x32xf32>
    %24 = vector.shape_cast %3 : vector<32xf32> to vector<1x32xf32>
    %25 = vector.broadcast %24 : vector<1x32xf32> to vector<16x32xf32>
    %26 = arith.mulf %23, %25 : vector<16x32xf32>
    %27 = vector.shape_cast %5 : vector<32xf32> to vector<1x32xf32>
    %28 = vector.broadcast %27 : vector<1x32xf32> to vector<16x32xf32>
    %29 = arith.addf %26, %28 : vector<16x32xf32>
    %c0_9 = arith.constant 0 : index
    %c0_10 = arith.constant 0 : index
    %30 = vector.load %arg2[%c0_9, %c0_10] : memref<33x112xf32, #tpu.memory_space<vmem>>, vector<32x112xf32>
    %cst_11 = arith.constant dense<0.000000e+00> : vector<16x112xf32>
    %31 = tpu.matmul %29, %30, %cst_11 {dimension_numbers = #tpu.dot_dimension_numbers<[1], [0], [0], [1], [0, 0, 1, 1], [], []>} : vector<16x32xf32>, vector<32x112xf32>, vector<16x112xf32> -> vector<16x112xf32>
    %c32 = arith.constant 32 : index
    %c0_12 = arith.constant 0 : index
    %32 = vector.load %arg2[%c32, %c0_12] : memref<33x112xf32, #tpu.memory_space<vmem>>, vector<1x112xf32>
    %33 = vector.shape_cast %32 : vector<1x112xf32> to vector<112xf32>
    %34 = vector.shape_cast %33 : vector<112xf32> to vector<1x112xf32>
    %35 = vector.broadcast %34 : vector<1x112xf32> to vector<16x112xf32>
    %36 = arith.addf %31, %35 : vector<16x112xf32>
    %37 = vector.extract_strided_slice %36 {offsets = [0, 0], sizes = [16, 48], strides = [1, 1]} : vector<16x112xf32> to vector<16x48xf32>
    %c0_13 = arith.constant 0 : index
    %c0_14 = arith.constant 0 : index
    %38 = vector.load %arg3[%c0_13, %c0_14] : memref<16x96xf32, #tpu.memory_space<vmem>>, vector<16x48xf32>
    %39 = arith.mulf %37, %38 : vector<16x48xf32>
    %40 = vector.extract_strided_slice %36 {offsets = [0, 48], sizes = [16, 48], strides = [1, 1]} : vector<16x112xf32> to vector<16x48xf32>
    %c0_15 = arith.constant 0 : index
    %c48 = arith.constant 48 : index
    %41 = vector.load %arg3[%c0_15, %c48] : memref<16x96xf32, #tpu.memory_space<vmem>>, vector<16x48xf32>
    %42 = arith.mulf %40, %41 : vector<16x48xf32>
    %43 = arith.addf %39, %42 : vector<16x48xf32>
    %44 = vector.extract_strided_slice %36 {offsets = [0, 96], sizes = [16, 16], strides = [1, 1]} : vector<16x112xf32> to vector<16x16xf32>
    %45 = vector.extract_strided_slice %43 {offsets = [0, 0], sizes = [8, 8], strides = [1, 1]} : vector<16x48xf32> to vector<8x8xf32>
    %46 = vector.extract_strided_slice %43 {offsets = [0, 32], sizes = [8, 8], strides = [1, 1]} : vector<16x48xf32> to vector<8x8xf32>
    %47 = vector.extract_strided_slice %44 {offsets = [0, 0], sizes = [8, 8], strides = [1, 1]} : vector<16x16xf32> to vector<8x8xf32>
    %48 = vector.extract_strided_slice %43 {offsets = [0, 8], sizes = [8, 8], strides = [1, 1]} : vector<16x48xf32> to vector<8x8xf32>
    %49 = vector.extract_strided_slice %43 {offsets = [0, 32], sizes = [8, 8], strides = [1, 1]} : vector<16x48xf32> to vector<8x8xf32>
    %50 = vector.extract_strided_slice %44 {offsets = [0, 0], sizes = [8, 8], strides = [1, 1]} : vector<16x16xf32> to vector<8x8xf32>
    %51 = vector.extract_strided_slice %43 {offsets = [0, 16], sizes = [8, 8], strides = [1, 1]} : vector<16x48xf32> to vector<8x8xf32>
    %52 = vector.extract_strided_slice %43 {offsets = [0, 40], sizes = [8, 8], strides = [1, 1]} : vector<16x48xf32> to vector<8x8xf32>
    %53 = vector.extract_strided_slice %44 {offsets = [0, 8], sizes = [8, 8], strides = [1, 1]} : vector<16x16xf32> to vector<8x8xf32>
    %54 = vector.extract_strided_slice %43 {offsets = [0, 24], sizes = [8, 8], strides = [1, 1]} : vector<16x48xf32> to vector<8x8xf32>
    %55 = vector.extract_strided_slice %43 {offsets = [0, 40], sizes = [8, 8], strides = [1, 1]} : vector<16x48xf32> to vector<8x8xf32>
    %56 = vector.extract_strided_slice %44 {offsets = [0, 8], sizes = [8, 8], strides = [1, 1]} : vector<16x16xf32> to vector<8x8xf32>
    %57 = vector.extract_strided_slice %43 {offsets = [8, 0], sizes = [8, 8], strides = [1, 1]} : vector<16x48xf32> to vector<8x8xf32>
    %58 = vector.extract_strided_slice %43 {offsets = [8, 32], sizes = [8, 8], strides = [1, 1]} : vector<16x48xf32> to vector<8x8xf32>
    %59 = vector.extract_strided_slice %44 {offsets = [8, 0], sizes = [8, 8], strides = [1, 1]} : vector<16x16xf32> to vector<8x8xf32>
    %60 = vector.extract_strided_slice %43 {offsets = [8, 8], sizes = [8, 8], strides = [1, 1]} : vector<16x48xf32> to vector<8x8xf32>
    %61 = vector.extract_strided_slice %43 {offsets = [8, 32], sizes = [8, 8], strides = [1, 1]} : vector<16x48xf32> to vector<8x8xf32>
    %62 = vector.extract_strided_slice %44 {offsets = [8, 0], sizes = [8, 8], strides = [1, 1]} : vector<16x16xf32> to vector<8x8xf32>
    %63 = vector.extract_strided_slice %43 {offsets = [8, 16], sizes = [8, 8], strides = [1, 1]} : vector<16x48xf32> to vector<8x8xf32>
    %64 = vector.extract_strided_slice %43 {offsets = [8, 40], sizes = [8, 8], strides = [1, 1]} : vector<16x48xf32> to vector<8x8xf32>
    %65 = vector.extract_strided_slice %44 {offsets = [8, 8], sizes = [8, 8], strides = [1, 1]} : vector<16x16xf32> to vector<8x8xf32>
    %66 = vector.extract_strided_slice %43 {offsets = [8, 24], sizes = [8, 8], strides = [1, 1]} : vector<16x48xf32> to vector<8x8xf32>
    %67 = vector.extract_strided_slice %43 {offsets = [8, 40], sizes = [8, 8], strides = [1, 1]} : vector<16x48xf32> to vector<8x8xf32>
    %68 = vector.extract_strided_slice %44 {offsets = [8, 8], sizes = [8, 8], strides = [1, 1]} : vector<16x16xf32> to vector<8x8xf32>
    %69 = vector.shape_cast %45 : vector<8x8xf32> to vector<1x8x8xf32>
    %70 = vector.shape_cast %48 : vector<8x8xf32> to vector<1x8x8xf32>
    %71 = vector.shape_cast %51 : vector<8x8xf32> to vector<1x8x8xf32>
    %72 = vector.shape_cast %54 : vector<8x8xf32> to vector<1x8x8xf32>
    %73 = vector.shape_cast %57 : vector<8x8xf32> to vector<1x8x8xf32>
    %74 = vector.shape_cast %60 : vector<8x8xf32> to vector<1x8x8xf32>
    %75 = vector.shape_cast %63 : vector<8x8xf32> to vector<1x8x8xf32>
    %76 = vector.shape_cast %66 : vector<8x8xf32> to vector<1x8x8xf32>
    %77 = tpu.concatenate %69, %70, %71, %72, %73, %74, %75, %76 in 0 : vector<1x8x8xf32>, vector<1x8x8xf32>, vector<1x8x8xf32>, vector<1x8x8xf32>, vector<1x8x8xf32>, vector<1x8x8xf32>, vector<1x8x8xf32>, vector<1x8x8xf32> -> vector<8x8x8xf32>
    %78 = vector.shape_cast %46 : vector<8x8xf32> to vector<1x8x8xf32>
    %79 = vector.shape_cast %49 : vector<8x8xf32> to vector<1x8x8xf32>
    %80 = vector.shape_cast %52 : vector<8x8xf32> to vector<1x8x8xf32>
    %81 = vector.shape_cast %55 : vector<8x8xf32> to vector<1x8x8xf32>
    %82 = vector.shape_cast %58 : vector<8x8xf32> to vector<1x8x8xf32>
    %83 = vector.shape_cast %61 : vector<8x8xf32> to vector<1x8x8xf32>
    %84 = vector.shape_cast %64 : vector<8x8xf32> to vector<1x8x8xf32>
    %85 = vector.shape_cast %67 : vector<8x8xf32> to vector<1x8x8xf32>
    %86 = tpu.concatenate %78, %79, %80, %81, %82, %83, %84, %85 in 0 : vector<1x8x8xf32>, vector<1x8x8xf32>, vector<1x8x8xf32>, vector<1x8x8xf32>, vector<1x8x8xf32>, vector<1x8x8xf32>, vector<1x8x8xf32>, vector<1x8x8xf32> -> vector<8x8x8xf32>
    %87 = vector.shape_cast %47 : vector<8x8xf32> to vector<1x8x8xf32>
    %88 = vector.shape_cast %50 : vector<8x8xf32> to vector<1x8x8xf32>
    %89 = vector.shape_cast %53 : vector<8x8xf32> to vector<1x8x8xf32>
    %90 = vector.shape_cast %56 : vector<8x8xf32> to vector<1x8x8xf32>
    %91 = vector.shape_cast %59 : vector<8x8xf32> to vector<1x8x8xf32>
    %92 = vector.shape_cast %62 : vector<8x8xf32> to vector<1x8x8xf32>
    %93 = vector.shape_cast %65 : vector<8x8xf32> to vector<1x8x8xf32>
    %94 = vector.shape_cast %68 : vector<8x8xf32> to vector<1x8x8xf32>
    %95 = tpu.concatenate %87, %88, %89, %90, %91, %92, %93, %94 in 0 : vector<1x8x8xf32>, vector<1x8x8xf32>, vector<1x8x8xf32>, vector<1x8x8xf32>, vector<1x8x8xf32>, vector<1x8x8xf32>, vector<1x8x8xf32>, vector<1x8x8xf32> -> vector<8x8x8xf32>
    "tpu.trace_start"() <{level = 10 : i32, message = "nqd,nkd->nqk"}> : () -> ()
    %cst_16 = arith.constant dense<0.000000e+00> : vector<8x8x8xf32>
    %96 = tpu.matmul %77, %86, %cst_16 {dimension_numbers = #tpu.dot_dimension_numbers<[2], [2], [1], [1], [0, 0, 0, 1, 1, 1], [0], [0]>} : vector<8x8x8xf32>, vector<8x8x8xf32>, vector<8x8x8xf32> -> vector<8x8x8xf32>
    "tpu.trace_stop"() : () -> ()
    %97 = tpu.iota {dimensions = array<i32: 0>} : vector<8x8xi32>
    %98 = tpu.iota {dimensions = array<i32: 1>} : vector<8x8xi32>
    %99 = arith.cmpi sge, %97, %98 : vector<8x8xi32>
    %100 = vector.shape_cast %99 : vector<8x8xi1> to vector<1x8x8xi1>
    %cst_17 = arith.constant -1.000000e+30 : f32
    %101 = vector.shape_cast %100 : vector<1x8x8xi1> to vector<1x8x8xi1>
    %102 = vector.broadcast %101 : vector<1x8x8xi1> to vector<8x8x8xi1>
    %103 = vector.broadcast %cst_17 : f32 to vector<8x8x8xf32>
    %104 = arith.select %102, %96, %103 : vector<8x8x8xi1>, vector<8x8x8xf32>
    %cst_18 = arith.constant dense<0xFF800000> : vector<8x8xf32>
    %105 = vector.multi_reduction <maximumf>, %104, %cst_18 [2] : vector<8x8x8xf32> to vector<8x8xf32>
    %106 = vector.shape_cast %105 : vector<8x8xf32> to vector<8x8x1xf32>
    %107 = vector.broadcast %106 : vector<8x8x1xf32> to vector<8x8x8xf32>
    %108 = arith.subf %104, %107 : vector<8x8x8xf32>
    %109 = math.exp %108 : vector<8x8x8xf32>
    %cst_19 = arith.constant dense<0.000000e+00> : vector<8x8xf32>
    %110 = vector.multi_reduction <add>, %109, %cst_19 [2] : vector<8x8x8xf32> to vector<8x8xf32>
    %111 = vector.shape_cast %110 : vector<8x8xf32> to vector<8x8x1xf32>
    %112 = tpu.reciprocal %111 {approx = true} : vector<8x8x1xf32> -> vector<8x8x1xf32>
    %113 = vector.broadcast %112 : vector<8x8x1xf32> to vector<8x8x8xf32>
    %114 = arith.mulf %109, %113 : vector<8x8x8xf32>
    "tpu.trace_start"() <{level = 10 : i32, message = "nqk,nkd->nqd"}> : () -> ()
    %cst_20 = arith.constant dense<0.000000e+00> : vector<8x8x8xf32>
    %115 = tpu.matmul %114, %95, %cst_20 {dimension_numbers = #tpu.dot_dimension_numbers<[2], [1], [1], [2], [0, 0, 0, 1, 1, 2], [0], [0]>} : vector<8x8x8xf32>, vector<8x8x8xf32>, vector<8x8x8xf32> -> vector<8x8x8xf32>
    "tpu.trace_stop"() : () -> ()
    %116 = vector.extract_strided_slice %115 {offsets = [0, 0, 0], sizes = [1, 8, 8], strides = [1, 1, 1]} : vector<8x8x8xf32> to vector<1x8x8xf32>
    %117 = vector.shape_cast %116 : vector<1x8x8xf32> to vector<8x8xf32>
    %118 = vector.extract_strided_slice %115 {offsets = [1, 0, 0], sizes = [1, 8, 8], strides = [1, 1, 1]} : vector<8x8x8xf32> to vector<1x8x8xf32>
    %119 = vector.shape_cast %118 : vector<1x8x8xf32> to vector<8x8xf32>
    %120 = vector.extract_strided_slice %115 {offsets = [2, 0, 0], sizes = [1, 8, 8], strides = [1, 1, 1]} : vector<8x8x8xf32> to vector<1x8x8xf32>
    %121 = vector.shape_cast %120 : vector<1x8x8xf32> to vector<8x8xf32>
    %122 = vector.extract_strided_slice %115 {offsets = [3, 0, 0], sizes = [1, 8, 8], strides = [1, 1, 1]} : vector<8x8x8xf32> to vector<1x8x8xf32>
    %123 = vector.shape_cast %122 : vector<1x8x8xf32> to vector<8x8xf32>
    %124 = tpu.concatenate %117, %119, %121, %123 in 1 : vector<8x8xf32>, vector<8x8xf32>, vector<8x8xf32>, vector<8x8xf32> -> vector<8x32xf32>
    %125 = vector.extract_strided_slice %115 {offsets = [4, 0, 0], sizes = [1, 8, 8], strides = [1, 1, 1]} : vector<8x8x8xf32> to vector<1x8x8xf32>
    %126 = vector.shape_cast %125 : vector<1x8x8xf32> to vector<8x8xf32>
    %127 = vector.extract_strided_slice %115 {offsets = [5, 0, 0], sizes = [1, 8, 8], strides = [1, 1, 1]} : vector<8x8x8xf32> to vector<1x8x8xf32>
    %128 = vector.shape_cast %127 : vector<1x8x8xf32> to vector<8x8xf32>
    %129 = vector.extract_strided_slice %115 {offsets = [6, 0, 0], sizes = [1, 8, 8], strides = [1, 1, 1]} : vector<8x8x8xf32> to vector<1x8x8xf32>
    %130 = vector.shape_cast %129 : vector<1x8x8xf32> to vector<8x8xf32>
    %131 = vector.extract_strided_slice %115 {offsets = [7, 0, 0], sizes = [1, 8, 8], strides = [1, 1, 1]} : vector<8x8x8xf32> to vector<1x8x8xf32>
    %132 = vector.shape_cast %131 : vector<1x8x8xf32> to vector<8x8xf32>
    %133 = tpu.concatenate %126, %128, %130, %132 in 1 : vector<8x8xf32>, vector<8x8xf32>, vector<8x8xf32>, vector<8x8xf32> -> vector<8x32xf32>
    %134 = tpu.concatenate %124, %133 in 0 : vector<8x32xf32>, vector<8x32xf32> -> vector<16x32xf32>
    %135 = arith.addf %1, %134 : vector<16x32xf32>
    %c2 = arith.constant 2 : index
    %c0_21 = arith.constant 0 : index
    %136 = vector.load %arg4[%c2, %c0_21] : memref<4x32xf32, #tpu.memory_space<vmem>>, vector<1x32xf32>
    %137 = vector.shape_cast %136 : vector<1x32xf32> to vector<32xf32>
    %c3 = arith.constant 3 : index
    %c0_22 = arith.constant 0 : index
    %138 = vector.load %arg4[%c3, %c0_22] : memref<4x32xf32, #tpu.memory_space<vmem>>, vector<1x32xf32>
    %139 = vector.shape_cast %138 : vector<1x32xf32> to vector<32xf32>
    %cst_23 = arith.constant dense<0.000000e+00> : vector<16xf32>
    %140 = vector.multi_reduction <add>, %135, %cst_23 [1] : vector<16x32xf32> to vector<16xf32>
    %141 = vector.shape_cast %140 : vector<16xf32> to vector<16x1xf32>
    %cst_24 = arith.constant 3.200000e+01 : f32
    %142 = vector.broadcast %cst_24 : f32 to vector<16x1xf32>
    %143 = arith.divf %141, %142 : vector<16x1xf32>
    %144 = vector.broadcast %143 : vector<16x1xf32> to vector<16x32xf32>
    %145 = arith.subf %135, %144 : vector<16x32xf32>
    %146 = arith.mulf %145, %145 : vector<16x32xf32>
    %cst_25 = arith.constant dense<0.000000e+00> : vector<16xf32>
    %147 = vector.multi_reduction <add>, %146, %cst_25 [1] : vector<16x32xf32> to vector<16xf32>
    %148 = vector.shape_cast %147 : vector<16xf32> to vector<16x1xf32>
    %cst_26 = arith.constant 3.200000e+01 : f32
    %149 = vector.broadcast %cst_26 : f32 to vector<16x1xf32>
    %150 = arith.divf %148, %149 : vector<16x1xf32>
    %151 = vector.broadcast %143 : vector<16x1xf32> to vector<16x32xf32>
    %152 = arith.subf %135, %151 : vector<16x32xf32>
    %cst_27 = arith.constant 9.99999974E-6 : f32
    %153 = vector.broadcast %cst_27 : f32 to vector<16x1xf32>
    %154 = arith.addf %150, %153 : vector<16x1xf32>
    %155 = math.rsqrt %154 : vector<16x1xf32>
    %156 = vector.broadcast %155 : vector<16x1xf32> to vector<16x32xf32>
    %157 = arith.mulf %152, %156 : vector<16x32xf32>
    %158 = vector.shape_cast %137 : vector<32xf32> to vector<1x32xf32>
    %159 = vector.broadcast %158 : vector<1x32xf32> to vector<16x32xf32>
    %160 = arith.mulf %157, %159 : vector<16x32xf32>
    %161 = vector.shape_cast %139 : vector<32xf32> to vector<1x32xf32>
    %162 = vector.broadcast %161 : vector<1x32xf32> to vector<16x32xf32>
    %163 = arith.addf %160, %162 : vector<16x32xf32>
    %c0_28 = arith.constant 0 : index
    %c0_29 = arith.constant 0 : index
    %164 = vector.load %arg5[%c0_28, %c0_29] : memref<33x128xf32, #tpu.memory_space<vmem>>, vector<32x128xf32>
    %cst_30 = arith.constant dense<0.000000e+00> : vector<16x128xf32>
    %165 = tpu.matmul %163, %164, %cst_30 {dimension_numbers = #tpu.dot_dimension_numbers<[1], [0], [0], [1], [0, 0, 1, 1], [], []>} : vector<16x32xf32>, vector<32x128xf32>, vector<16x128xf32> -> vector<16x128xf32>
    %c32_31 = arith.constant 32 : index
    %c0_32 = arith.constant 0 : index
    %166 = vector.load %arg5[%c32_31, %c0_32] : memref<33x128xf32, #tpu.memory_space<vmem>>, vector<1x128xf32>
    %167 = vector.shape_cast %166 : vector<1x128xf32> to vector<128xf32>
    %168 = vector.shape_cast %167 : vector<128xf32> to vector<1x128xf32>
    %169 = vector.broadcast %168 : vector<1x128xf32> to vector<16x128xf32>
    %170 = arith.addf %165, %169 : vector<16x128xf32>
    %c0_33 = arith.constant 0 : index
    %c0_34 = arith.constant 0 : index
    %171 = vector.load %arg6[%c0_33, %c0_34] : memref<129x256xf32, #tpu.memory_space<vmem>>, vector<128x256xf32>
    %cst_35 = arith.constant dense<0.000000e+00> : vector<16x256xf32>
    %172 = tpu.matmul %170, %171, %cst_35 {dimension_numbers = #tpu.dot_dimension_numbers<[1], [0], [0], [1], [0, 0, 1, 1], [], []>} : vector<16x128xf32>, vector<128x256xf32>, vector<16x256xf32> -> vector<16x256xf32>
    %c128 = arith.constant 128 : index
    %c0_36 = arith.constant 0 : index
    %173 = vector.load %arg6[%c128, %c0_36] : memref<129x256xf32, #tpu.memory_space<vmem>>, vector<1x256xf32>
    %174 = vector.shape_cast %173 : vector<1x256xf32> to vector<256xf32>
    %175 = vector.shape_cast %174 : vector<256xf32> to vector<1x256xf32>
    %176 = vector.broadcast %175 : vector<1x256xf32> to vector<16x256xf32>
    %177 = arith.addf %172, %176 : vector<16x256xf32>
    %178 = vector.extract_strided_slice %177 {offsets = [0, 0], sizes = [16, 128], strides = [1, 1]} : vector<16x256xf32> to vector<16x128xf32>
    %179 = vector.extract_strided_slice %177 {offsets = [0, 128], sizes = [16, 128], strides = [1, 1]} : vector<16x256xf32> to vector<16x128xf32>
    %c0_37 = arith.constant 0 : index
    %c0_38 = arith.constant 0 : index
    %180 = memref.load %arg8[%c0_37, %c0_38] : memref<1x1xf32, #tpu.memory_space<smem>>
    %181 = vector.broadcast %180 : f32 to vector<16x128xf32>
    %182 = arith.mulf %181, %178 : vector<16x128xf32>
    %183 = arith.negf %182 : vector<16x128xf32>
    %184 = math.exp %183 : vector<16x128xf32>
    %cst_39 = arith.constant 1.000000e+00 : f32
    %185 = vector.broadcast %cst_39 : f32 to vector<16x128xf32>
    %186 = arith.addf %185, %184 : vector<16x128xf32>
    %187 = arith.divf %185, %186 : vector<16x128xf32>
    %188 = arith.mulf %178, %187 : vector<16x128xf32>
    %189 = arith.mulf %188, %179 : vector<16x128xf32>
    %c0_40 = arith.constant 0 : index
    %c0_41 = arith.constant 0 : index
    %190 = vector.load %arg7[%c0_40, %c0_41] : memref<129x32xf32, #tpu.memory_space<vmem>>, vector<128x32xf32>
    %cst_42 = arith.constant dense<0.000000e+00> : vector<16x32xf32>
    %191 = tpu.matmul %189, %190, %cst_42 {dimension_numbers = #tpu.dot_dimension_numbers<[1], [0], [0], [1], [0, 0, 1, 1], [], []>} : vector<16x128xf32>, vector<128x32xf32>, vector<16x32xf32> -> vector<16x32xf32>
    %c128_43 = arith.constant 128 : index
    %c0_44 = arith.constant 0 : index
    %192 = vector.load %arg7[%c128_43, %c0_44] : memref<129x32xf32, #tpu.memory_space<vmem>>, vector<1x32xf32>
    %193 = vector.shape_cast %192 : vector<1x32xf32> to vector<32xf32>
    %194 = vector.shape_cast %193 : vector<32xf32> to vector<1x32xf32>
    %195 = vector.broadcast %194 : vector<1x32xf32> to vector<16x32xf32>
    %196 = arith.addf %191, %195 : vector<16x32xf32>
    %197 = arith.addf %135, %196 : vector<16x32xf32>
    %198 = vector.shape_cast %197 : vector<16x32xf32> to vector<2x8x32xf32>
    %c0_45 = arith.constant 0 : index
    %c0_46 = arith.constant 0 : index
    %c0_47 = arith.constant 0 : index
    %199 = vector.load %arg9[%c0_45, %c0_46, %c0_47] : memref<2x8x32xf32, #tpu.memory_space<vmem>>, vector<2x8x32xf32>
    tpu.vector_store %arg9[%c0_45, %c0_46, %c0_47], %198 {strides = array<i32>} : memref<2x8x32xf32, #tpu.memory_space<vmem>>, vector<2x8x32xf32>,
    return
  }
  func.func @transform_0(%arg0: i32) -> (i32, i32, i32) {
    %c0_i32 = arith.constant 0 : i32
    %c0_i32_0 = arith.constant 0 : i32
    %c0_i32_1 = arith.constant 0 : i32
    return %arg0, %c0_i32, %c0_i32_0 : i32, i32, i32
  }
  func.func @transform_1(%arg0: i32) -> (i32, i32) {
    %c0_i32 = arith.constant 0 : i32
    %c0_i32_0 = arith.constant 0 : i32
    %c0_i32_1 = arith.constant 0 : i32
    return %c0_i32, %c0_i32_0 : i32, i32
  }
  func.func @transform_2(%arg0: i32) -> (i32, i32) {
    %c0_i32 = arith.constant 0 : i32
    %c0_i32_0 = arith.constant 0 : i32
    %c0_i32_1 = arith.constant 0 : i32
    return %c0_i32, %c0_i32_0 : i32, i32
  }
  func.func @transform_3(%arg0: i32) -> (i32, i32) {
    %c0_i32 = arith.constant 0 : i32
    %c0_i32_0 = arith.constant 0 : i32
    %c0_i32_1 = arith.constant 0 : i32
    return %c0_i32, %c0_i32_0 : i32, i32
  }
  func.func @transform_4(%arg0: i32) -> (i32, i32) {
    %c0_i32 = arith.constant 0 : i32
    %c0_i32_0 = arith.constant 0 : i32
    %c0_i32_1 = arith.constant 0 : i32
    return %c0_i32, %c0_i32_0 : i32, i32
  }
  func.func @transform_5(%arg0: i32) -> (i32, i32) {
    %c0_i32 = arith.constant 0 : i32
    %c0_i32_0 = arith.constant 0 : i32
    %c0_i32_1 = arith.constant 0 : i32
    return %c0_i32, %c0_i32_0 : i32, i32
  }
  func.func @transform_6(%arg0: i32) -> (i32, i32) {
    %c0_i32 = arith.constant 0 : i32
    %c0_i32_0 = arith.constant 0 : i32
    %c0_i32_1 = arith.constant 0 : i32
    return %c0_i32, %c0_i32_0 : i32, i32
  }
  func.func @transform_7(%arg0: i32) -> (i32, i32) {
    %c0_i32 = arith.constant 0 : i32
    %c0_i32_0 = arith.constant 0 : i32
    %c0_i32_1 = arith.constant 0 : i32
    return %c0_i32, %c0_i32_0 : i32, i32
  }
  func.func @transform_8(%arg0: i32) -> (i32, i32, i32) {
    %c0_i32 = arith.constant 0 : i32
    %c0_i32_0 = arith.constant 0 : i32
    %c0_i32_1 = arith.constant 0 : i32
    return %arg0, %c0_i32, %c0_i32_0 : i32, i32, i32
  }
}

</mosaic_0001>

<llo_original>
// kernel: tpu_custom_call.1
$region0: #{tpu_custom_call.1}
  #allocation0 [shape = 'u32[]', space=smem, size = 0x4, offset = 0x4, fixed_abs, tag = 'smem constant byte address 0x4 - core index']
  #allocation1 [shape = 'u32[144,128]{1,0:T(1,128)}', space=vmem, size = 0x12000, scoped, tag = 'internal scratch']
  #allocation2 [shape = 'f32[1,1]{1,0:T(1,128)S(6)}', space=smem, size = 0x200, scoped, tag = 'scoped memory for tpu_custom_call.1']
  %s0 = inlined_call_operand.vmem [shape: f32[2,8,32], index: 0, kind: input, shape index: {}]
  %s1 = inlined_call_operand.vmem [shape: f32[33,112], index: 1, kind: input, shape index: {}]
  %s2 = inlined_call_operand.vmem [shape: f32[16,96], index: 2, kind: input, shape index: {}]
  %s3 = inlined_call_operand.vmem [shape: f32[4,32], index: 3, kind: input, shape index: {}]
  %s4 = inlined_call_operand.vmem [shape: f32[33,128], index: 4, kind: input, shape index: {}]
  %s5 = inlined_call_operand.hbm [shape: f32[129,256], index: 5, kind: input, shape index: {}]
  %s6 = inlined_call_operand.vmem [shape: f32[129,32], index: 6, kind: input, shape index: {}]
  %s7 = inlined_call_operand.<no memory space> [shape: f32[1,1], index: 7, kind: input, shape index: {}]
  %s8 = inlined_call_operand.hbm [shape: f32[2,8,32], index: 8, kind: output, shape index: {}]
  %s9 = sld [smem:[#allocation0]]
  $region46: #{tpu_custom_call.1} parent=0
    _
  %s11 = ssub.s32 1, %s9
  %s12 = scalar_select 0, %s11, %s9
  %13 = sst [smem:[#allocation2]] %s7
  $region1: #{tpu_custom_call.1} parent=0
    #allocation3 [shape = 'u8[139264]{0}', space=vmem, size = 0x22000, scoped, tag = 'input window, operand 5, single buffered']
    #allocation4 [shape = 's32[1]{0}', space=sflag, size = 0x4, scoped, tag = 'scoped memory for tpu_custom_call.1']
    #allocation5 [shape = 's32[1]{0}', space=sflag, size = 0x4, scoped, tag = 'scoped memory for tpu_custom_call.1']
    #allocation6 [shape = 'u8[8192]{0}', space=vmem, size = 0x2000, scoped, tag = 'output window, operand 0, single buffered']
    %14 = vsyncpa [#allocation4], 0
    %15 = vsyncpa [#allocation5], 0
    // Predicated region
    $region2: #{tpu_custom_call.1} parent=1 // pred_check
      _
    $region3: #{tpu_custom_call.1} parent=1 // pred_check_branch
      %17 = sbr.rel (0) target = $region5
    $region4: #{tpu_custom_call.1} parent=1 // pred_region
      _
    $region5: #{tpu_custom_call.1} parent=1 // pred_fallthru
      _
    // Predicated region
    $region6: #{tpu_custom_call.1} parent=1 // pred_check
      _
    $region7: #{tpu_custom_call.1} parent=1 // pred_check_branch
      %19 = sbr.rel (0) target = $region9
    $region8: #{tpu_custom_call.1} parent=1 // pred_region
      _
    $region9: #{tpu_custom_call.1} parent=1 // pred_fallthru
      _
    // Predicated region
    $region10: #{tpu_custom_call.1} parent=1 // pred_check
      _
    $region11: #{tpu_custom_call.1} parent=1 // pred_check_branch
      %21 = sbr.rel (0) target = $region13
    $region12: #{tpu_custom_call.1} parent=1 // pred_region
      _
    $region13: #{tpu_custom_call.1} parent=1 // pred_fallthru
      _
    // Predicated region
    $region14: #{tpu_custom_call.1} parent=1 // pred_check
      _
    $region15: #{tpu_custom_call.1} parent=1 // pred_check_branch
      %23 = sbr.rel (0) target = $region17
    $region16: #{tpu_custom_call.1} parent=1 // pred_region
      _
    $region17: #{tpu_custom_call.1} parent=1 // pred_fallthru
      _
    // Predicated region
    $region18: #{tpu_custom_call.1} parent=1 // pred_check
      _
    $region19: #{tpu_custom_call.1} parent=1 // pred_check_branch
      %25 = sbr.rel (0) target = $region21
    $region20: #{tpu_custom_call.1} parent=1 // pred_region
      _
    $region21: #{tpu_custom_call.1} parent=1 // pred_fallthru
      _
    // Predicated region
    $region22: #{tpu_custom_call.1} parent=1 // pred_check
      _
    $region23: #{tpu_custom_call.1} parent=1 // pred_check_branch
      %27 = sbr.rel (0) target = $region25
    $region24: #{tpu_custom_call.1} parent=1 // pred_region
      %s29 = ssub.s32 4352, 4352
      %30 = vsyncadd [#allocation4], %s29
      %s31 = sshll.u32 [#allocation3], 4
      %s32 = int_to_ptr.vmem [resolvable:$true] %s31
      %37 = dma.hbm_to_vmem [thread:$0]  %s5, 4352, %s32, [#allocation4], 256, 256, 16
    $region25: #{tpu_custom_call.1} parent=1 // pred_fallthru
      _
    // Predicated region
    $region26: #{tpu_custom_call.1} parent=1 // pred_check
      _
    $region27: #{tpu_custom_call.1} parent=1 // pred_check_branch
      %39 = sbr.rel (0) target = $region29
    $region28: #{tpu_custom_call.1} parent=1 // pred_region
      _
    $region29: #{tpu_custom_call.1} parent=1 // pred_fallthru
      _
    // Predicated region
    $region30: #{tpu_custom_call.1} parent=1 // pred_check
      _
    $region31: #{tpu_custom_call.1} parent=1 // pred_check_branch
      %41 = sbr.rel (0) target = $region33
    $region32: #{tpu_custom_call.1} parent=1 // pred_region
      _
    $region33: #{tpu_custom_call.1} parent=1 // pred_fallthru
      _
    // Predicated region
    $region34: #{tpu_custom_call.1} parent=1 // pred_check
      _
    $region35: #{tpu_custom_call.1} parent=1 // pred_check_branch
      %43 = sbr.rel (0) target = $region37
    $region36: #{tpu_custom_call.1} parent=1 // pred_region
      %44 = dma.done [#allocation4], 4352
    $region37: #{tpu_custom_call.1} parent=1 // pred_fallthru
      _
    %v45 = vld [vmem:[%s0] sm:$0xff]
    %v46 = vld [vmem:[%s0 + $0x8] sm:$0xff]
    %v47 = vld [vmem:[%s3] sm:$0x1]
    %v48 = vld [vmem:[%s3 + $0x1] sm:$0x1]
    %vm49 = vcmask 261120
    %v50 = vsel %vm49, %v45, 0.0
    %51 = vadd.xlane.f32.xlu0 %v50
    %v52 = vpop.xlane.xlu0 %51
    %v53 = vsel %vm49, %v46, 0.0
    %54 = vadd.xlane.f32.xlu0 %v53
    %v55 = vpop.xlane.xlu0 %54
    %v56 = vrcp.pop 32.0
    %v57 = vmul.f32 %v52, %v56
    %v58 = vmul.f32 %v55, %v56
    %v59 = vsub.f32 %v45, %v57
    %v60 = vsub.f32 %v46, %v58
    %v61 = vmul.f32 %v59, %v59
    %v62 = vmul.f32 %v60, %v60
    %v63 = vsel %vm49, %v61, 0.0
    %64 = vadd.xlane.f32.xlu0 %v63
    %v65 = vpop.xlane.xlu0 %64
    %v66 = vsel %vm49, %v62, 0.0
    %67 = vadd.xlane.f32.xlu0 %v66
    %v68 = vpop.xlane.xlu0 %67
    %v69 = vmul.f32 %v65, %v56
    %v70 = vmul.f32 %v68, %v56
    %v71 = vadd.f32 %v69, 1e-05
    %v72 = vadd.f32 %v70, 1e-05
    %v73 = vrsqrt.pop %v71
    %v74 = vrsqrt.pop %v72
    %v75 = vmul.f32 %v59, %v73
    %v76 = vmul.f32 %v60, %v74
    %v77 = vlaneseq
    %v78 = vshrl.u32 %v77, 7
    %v79 = vsub.s32 0, %v78
    %v80 = vrot.slane %v47, %v79
    %v81 = vmul.f32 %v75, %v80
    %v82 = vmul.f32 %v76, %v80
    %v83 = vlaneseq
    %v84 = vshrl.u32 %v83, 7
    %v85 = vsub.s32 0, %v84
    %v86 = vrot.slane %v48, %v85
    %v87 = vadd.f32 %v81, %v86
    %v88 = vadd.f32 %v82, %v86
    %v89 = vld [vmem:[%s1] sm:$0xff]
    %v90 = vld [vmem:[%s1 + $0x8] sm:$0xff]
    %v91 = vld [vmem:[%s1 + $0x10] sm:$0xff]
    %v92 = vld [vmem:[%s1 + $0x18] sm:$0xff]
    %v93 = vld [vmem:[%s1 + $0x20] sm:$0x1]
    %v94 = vlaneseq
    %v95 = vshrl.u32 %v94, 7
    %v96 = vsub.s32 0, %v95
    %v97 = vrot.slane %v93, %v96
    %v99 = vsel %vm49, %v87, 0
    %v102 = vsel %vm49, %v88, 0
    %104 = vmatprep.subr.mxu0 0.0
    %105 = vmatpush1.msra.mxu0 %v89
    %106 = vmatprep.subr.mxu0 0.0
    %107 = vmatpush1.msra.mxu0 %v90
    %108 = vmatprep.subr.mxu0 0.0
    %109 = vmatpush1.msra.mxu0 %v91
    %110 = vmatprep.subr.mxu0 0.0
    %111 = vmatpush1.msra.mxu0 %v92
    %112 = vmatprep.subr.mxu0 0.0
    %113 = vmatpush1.msra.mxu0 0.0
    %114 = vmatprep.subr.mxu0 0.0
    %115 = vmatpush1.msra.mxu0 0.0
    %116 = vmatprep.subr.mxu0 0.0
    %117 = vmatpush1.msra.mxu0 0.0
    %118 = vmatprep.subr.mxu0 0.0
    %119 = vmatpush1.msra.mxu0 0.0
    %120 = vmatprep.subr.mxu0 0.0
    %121 = vmatpush1.msra.mxu0 0.0
    %122 = vmatprep.subr.mxu0 0.0
    %123 = vmatpush1.msra.mxu0 0.0
    %124 = vmatprep.subr.mxu0 0.0
    %125 = vmatpush1.msra.mxu0 0.0
    %126 = vmatprep.subr.mxu0 0.0
    %127 = vmatpush1.msra.mxu0 0.0
    %128 = vmatprep.subr.mxu0 0.0
    %129 = vmatpush1.msra.mxu0 0.0
    %130 = vmatprep.subr.mxu0 0.0
    %131 = vmatpush1.msra.mxu0 0.0
    %132 = vmatprep.subr.mxu0 0.0
    %133 = vmatpush1.msra.mxu0 0.0
    %134 = vmatprep.subr.mxu0 0.0
    %135 = vmatpush1.msra.mxu0 0.0
    %136 = vmatprep.subr.mxu0 0.0
    %137 = vmatpush1.msra.mxu0 0.0
    %138 = vmatprep.subr.mxu0 0.0
    %139 = vmatpush1.msra.mxu0 0.0
    %140 = vmatprep.subr.mxu0 0.0
    %141 = vmatpush1.msra.mxu0 0.0
    %142 = vmatprep.subr.mxu0 0.0
    %143 = vmatpush1.msra.mxu0 0.0
    %144 = vmatprep.subr.mxu0 0.0
    %145 = vmatpush1.msra.mxu0 0.0
    %146 = vmatprep.subr.mxu0 0.0
    %147 = vmatpush1.msra.mxu0 0.0
    %148 = vmatprep.subr.mxu0 0.0
    %149 = vmatpush1.msra.mxu0 0.0
    %150 = vmatprep.subr.mxu0 0.0
    %151 = vmatpush1.msra.mxu0 0.0
    %152 = vmatprep.subr.mxu0 0.0
    %153 = vmatpush1.msra.mxu0 0.0
    %154 = vmatprep.subr.mxu0 0.0
    %155 = vmatpush1.msra.mxu0 0.0
    %156 = vmatprep.subr.mxu0 0.0
    %157 = vmatpush1.msra.mxu0 0.0
    %158 = vmatprep.subr.mxu0 0.0
    %159 = vmatpush1.msra.mxu0 0.0
    %160 = vmatprep.subr.mxu0 0.0
    %161 = vmatpush1.msra.mxu0 0.0
    %162 = vmatprep.subr.mxu0 0.0
    %163 = vmatpush1.msra.mxu0 0.0
    %164 = vmatprep.subr.mxu0 0.0
    %165 = vmatpush1.msra.mxu0 0.0
    %166 = vmatprep.subr.mxu0 0.0
    %167 = vmatpush1.msra.mxu0 0.0
    %168 = vmatprep.mubr.f32.mxu0 0.0
    %169 = vmatmul.mubr.f32.gmra.mrb[0].mxu0 %v99
    %v170 = vpop.f32.mrb[0].mxu0
    %v171 = vadd.f32 %v97, %v170
    %v172 = vpop.f32.mrb[0].mxu0
    %173 = vmatprep.mubr.f32.mxu0 0.0
    %174 = vmatmul.mubr.f32.gmra.mrb[0].mxu0 %v102
    %v175 = vpop.f32.mrb[0].mxu0
    %v176 = vadd.f32 %v97, %v175
    %v177 = vpop.f32.mrb[0].mxu0
    %178 = vdwg.mxu0
    %v179 = vld [vmem:[%s2] sm:$0xff]
    %v180 = vld [vmem:[%s2 + $0x8] sm:$0xff]
    %v181 = vmul.f32 %v171, %v179
    %v182 = vmul.f32 %v176, %v180
    %185 = vrot.lane.b32.xlu0 %v181, 80
    %v186 = vpop.permute.xlu0 %185
    %187 = vrot.lane.b32.xlu0 %v182, 80
    %v188 = vpop.permute.xlu0 %187
    %v191 = vadd.f32 %v181, %v186
    %v192 = vadd.f32 %v182, %v188
    %194 = vrot.lane.b32.xlu0 %v191, 120
    %v195 = vpop.permute.xlu0 %194
    %196 = vrot.lane.b32.xlu0 %v191, 112
    %v197 = vpop.permute.xlu0 %196
    %198 = vrot.lane.b32.xlu0 %v191, 104
    %v199 = vpop.permute.xlu0 %198
    %201 = vrot.lane.b32.xlu0 %v192, 120
    %v202 = vpop.permute.xlu0 %201
    %203 = vrot.lane.b32.xlu0 %v192, 112
    %v204 = vpop.permute.xlu0 %203
    %205 = vrot.lane.b32.xlu0 %v192, 104
    %v206 = vpop.permute.xlu0 %205
    %208 = vrot.lane.b32.xlu0 %v171, 120
    %v209 = vpop.permute.xlu0 %208
    %211 = vrot.lane.b32.xlu0 %v176, 120
    %v212 = vpop.permute.xlu0 %211
    %213 = vrot.lane.b32.xlu0 %v191, 96
    %v214 = vpop.permute.xlu0 %213
    %vm215 = vcmask 64512
    %v216 = vsel %vm215, %v191, 0
    %v218 = vsel %vm215, %v214, 0
    %220 = vmatprep.subr.mxu0 0.0
    %221 = vmatpush1.xpose.msra.mxu0 %v218
    %222 = vmatprep.subr.mxu0 0.0
    %223 = vmatpush1.xpose.msra.mxu0 0.0
    %224 = vmatprep.subr.mxu0 0.0
    %225 = vmatpush1.xpose.msra.mxu0 0.0
    %226 = vmatprep.subr.mxu0 0.0
    %227 = vmatpush1.xpose.msra.mxu0 0.0
    %228 = vmatprep.subr.mxu0 0.0
    %229 = vmatpush1.xpose.msra.mxu0 0.0
    %230 = vmatprep.subr.mxu0 0.0
    %231 = vmatpush1.xpose.msra.mxu0 0.0
    %232 = vmatprep.subr.mxu0 0.0
    %233 = vmatpush1.xpose.msra.mxu0 0.0
    %234 = vmatprep.subr.mxu0 0.0
    %235 = vmatpush1.xpose.msra.mxu0 0.0
    %236 = vmatprep.subr.mxu0 0.0
    %237 = vmatpush1.xpose.msra.mxu0 0.0
    %238 = vmatprep.subr.mxu0 0.0
    %239 = vmatpush1.xpose.msra.mxu0 0.0
    %240 = vmatprep.subr.mxu0 0.0
    %241 = vmatpush1.xpose.msra.mxu0 0.0
    %242 = vmatprep.subr.mxu0 0.0
    %243 = vmatpush1.xpose.msra.mxu0 0.0
    %244 = vmatprep.subr.mxu0 0.0
    %245 = vmatpush1.xpose.msra.mxu0 0.0
    %246 = vmatprep.subr.mxu0 0.0
    %247 = vmatpush1.xpose.msra.mxu0 0.0
    %248 = vmatprep.subr.mxu0 0.0
    %249 = vmatpush1.xpose.msra.mxu0 0.0
    %250 = vmatprep.subr.mxu0 0.0
    %251 = vmatpush1.xpose.msra.mxu0 0.0
    %252 = vmatprep.subr.mxu0 0.0
    %253 = vmatpush1.xpose.msra.mxu0 0.0
    %254 = vmatprep.subr.mxu0 0.0
    %255 = vmatpush1.xpose.msra.mxu0 0.0
    %256 = vmatprep.subr.mxu0 0.0
    %257 = vmatpush1.xpose.msra.mxu0 0.0
    %258 = vmatprep.subr.mxu0 0.0
    %259 = vmatpush1.xpose.msra.mxu0 0.0
    %260 = vmatprep.subr.mxu0 0.0
    %261 = vmatpush1.xpose.msra.mxu0 0.0
    %262 = vmatprep.subr.mxu0 0.0
    %263 = vmatpush1.xpose.msra.mxu0 0.0
    %264 = vmatprep.subr.mxu0 0.0
    %265 = vmatpush1.xpose.msra.mxu0 0.0
    %266 = vmatprep.subr.mxu0 0.0
    %267 = vmatpush1.xpose.msra.mxu0 0.0
    %268 = vmatprep.subr.mxu0 0.0
    %269 = vmatpush1.xpose.msra.mxu0 0.0
    %270 = vmatprep.subr.mxu0 0.0
    %271 = vmatpush1.xpose.msra.mxu0 0.0
    %272 = vmatprep.subr.mxu0 0.0
    %273 = vmatpush1.xpose.msra.mxu0 0.0
    %274 = vmatprep.subr.mxu0 0.0
    %275 = vmatpush1.xpose.msra.mxu0 0.0
    %276 = vmatprep.subr.mxu0 0.0
    %277 = vmatpush1.xpose.msra.mxu0 0.0
    %278 = vmatprep.subr.mxu0 0.0
    %279 = vmatpush1.xpose.msra.mxu0 0.0
    %280 = vmatprep.subr.mxu0 0.0
    %281 = vmatpush1.xpose.msra.mxu0 0.0
    %282 = vmatprep.subr.mxu0 0.0
    %283 = vmatpush1.xpose.msra.mxu0 0.0
    %284 = vmatprep.mubr.f32.mxu0 0.0
    %285 = vmatmul.mubr.f32.gmra.mrb[0].mxu0 %v216
    %v286 = vpop.f32.mrb[0].mxu0
    %v287 = vadd.f32 0.0, %v286
    %v288 = vpop.f32.mrb[0].mxu0
    %289 = vdwg.mxu0
    %v290 = vsel %vm215, %v195, 0
    %292 = vmatprep.subr.mxu0 0.0
    %293 = vmatpush1.xpose.msra.mxu0 %v218
    %294 = vmatprep.subr.mxu0 0.0
    %295 = vmatpush1.xpose.msra.mxu0 0.0
    %296 = vmatprep.subr.mxu0 0.0
    %297 = vmatpush1.xpose.msra.mxu0 0.0
    %298 = vmatprep.subr.mxu0 0.0
    %299 = vmatpush1.xpose.msra.mxu0 0.0
    %300 = vmatprep.subr.mxu0 0.0
    %301 = vmatpush1.xpose.msra.mxu0 0.0
    %302 = vmatprep.subr.mxu0 0.0
    %303 = vmatpush1.xpose.msra.mxu0 0.0
    %304 = vmatprep.subr.mxu0 0.0
    %305 = vmatpush1.xpose.msra.mxu0 0.0
    %306 = vmatprep.subr.mxu0 0.0
    %307 = vmatpush1.xpose.msra.mxu0 0.0
    %308 = vmatprep.subr.mxu0 0.0
    %309 = vmatpush1.xpose.msra.mxu0 0.0
    %310 = vmatprep.subr.mxu0 0.0
    %311 = vmatpush1.xpose.msra.mxu0 0.0
    %312 = vmatprep.subr.mxu0 0.0
    %313 = vmatpush1.xpose.msra.mxu0 0.0
    %314 = vmatprep.subr.mxu0 0.0
    %315 = vmatpush1.xpose.msra.mxu0 0.0
    %316 = vmatprep.subr.mxu0 0.0
    %317 = vmatpush1.xpose.msra.mxu0 0.0
    %318 = vmatprep.subr.mxu0 0.0
    %319 = vmatpush1.xpose.msra.mxu0 0.0
    %320 = vmatprep.subr.mxu0 0.0
    %321 = vmatpush1.xpose.msra.mxu0 0.0
    %322 = vmatprep.subr.mxu0 0.0
    %323 = vmatpush1.xpose.msra.mxu0 0.0
    %324 = vmatprep.subr.mxu0 0.0
    %325 = vmatpush1.xpose.msra.mxu0 0.0
    %326 = vmatprep.subr.mxu0 0.0
    %327 = vmatpush1.xpose.msra.mxu0 0.0
    %328 = vmatprep.subr.mxu0 0.0
    %329 = vmatpush1.xpose.msra.mxu0 0.0
    %330 = vmatprep.subr.mxu0 0.0
    %331 = vmatpush1.xpose.msra.mxu0 0.0
    %332 = vmatprep.subr.mxu0 0.0
    %333 = vmatpush1.xpose.msra.mxu0 0.0
    %334 = vmatprep.subr.mxu0 0.0
    %335 = vmatpush1.xpose.msra.mxu0 0.0
    %336 = vmatprep.subr.mxu0 0.0
    %337 = vmatpush1.xpose.msra.mxu0 0.0
    %338 = vmatprep.subr.mxu0 0.0
    %339 = vmatpush1.xpose.msra.mxu0 0.0
    %340 = vmatprep.subr.mxu0 0.0
    %341 = vmatpush1.xpose.msra.mxu0 0.0
    %342 = vmatprep.subr.mxu0 0.0
    %343 = vmatpush1.xpose.msra.mxu0 0.0
    %344 = vmatprep.subr.mxu0 0.0
    %345 = vmatpush1.xpose.msra.mxu0 0.0
    %346 = vmatprep.subr.mxu0 0.0
    %347 = vmatpush1.xpose.msra.mxu0 0.0
    %348 = vmatprep.subr.mxu0 0.0
    %349 = vmatpush1.xpose.msra.mxu0 0.0
    %350 = vmatprep.subr.mxu0 0.0
    %351 = vmatpush1.xpose.msra.mxu0 0.0
    %352 = vmatprep.subr.mxu0 0.0
    %353 = vmatpush1.xpose.msra.mxu0 0.0
    %354 = vmatprep.subr.mxu0 0.0
    %355 = vmatpush1.xpose.msra.mxu0 0.0
    %356 = vmatprep.mubr.f32.mxu0 0.0
    %357 = vmatmul.mubr.f32.gmra.mrb[0].mxu0 %v290
    %v358 = vpop.f32.mrb[0].mxu0
    %v359 = vadd.f32 0.0, %v358
    %v360 = vpop.f32.mrb[0].mxu0
    %361 = vdwg.mxu0
    %362 = vrot.lane.b32.xlu0 %v195, 96
    %v363 = vpop.permute.xlu0 %362
    %v364 = vsel %vm215, %v197, 0
    %v366 = vsel %vm215, %v363, 0
    %368 = vmatprep.subr.mxu0 0.0
    %369 = vmatpush1.xpose.msra.mxu0 %v366
    %370 = vmatprep.subr.mxu0 0.0
    %371 = vmatpush1.xpose.msra.mxu0 0.0
    %372 = vmatprep.subr.mxu0 0.0
    %373 = vmatpush1.xpose.msra.mxu0 0.0
    %374 = vmatprep.subr.mxu0 0.0
    %375 = vmatpush1.xpose.msra.mxu0 0.0
    %376 = vmatprep.subr.mxu0 0.0
    %377 = vmatpush1.xpose.msra.mxu0 0.0
    %378 = vmatprep.subr.mxu0 0.0
    %379 = vmatpush1.xpose.msra.mxu0 0.0
    %380 = vmatprep.subr.mxu0 0.0
    %381 = vmatpush1.xpose.msra.mxu0 0.0
    %382 = vmatprep.subr.mxu0 0.0
    %383 = vmatpush1.xpose.msra.mxu0 0.0
    %384 = vmatprep.subr.mxu0 0.0
    %385 = vmatpush1.xpose.msra.mxu0 0.0
    %386 = vmatprep.subr.mxu0 0.0
    %387 = vmatpush1.xpose.msra.mxu0 0.0
    %388 = vmatprep.subr.mxu0 0.0
    %389 = vmatpush1.xpose.msra.mxu0 0.0
    %390 = vmatprep.subr.mxu0 0.0
    %391 = vmatpush1.xpose.msra.mxu0 0.0
    %392 = vmatprep.subr.mxu0 0.0
    %393 = vmatpush1.xpose.msra.mxu0 0.0
    %394 = vmatprep.subr.mxu0 0.0
    %395 = vmatpush1.xpose.msra.mxu0 0.0
    %396 = vmatprep.subr.mxu0 0.0
    %397 = vmatpush1.xpose.msra.mxu0 0.0
    %398 = vmatprep.subr.mxu0 0.0
    %399 = vmatpush1.xpose.msra.mxu0 0.0
    %400 = vmatprep.subr.mxu0 0.0
    %401 = vmatpush1.xpose.msra.mxu0 0.0
    %402 = vmatprep.subr.mxu0 0.0
    %403 = vmatpush1.xpose.msra.mxu0 0.0
    %404 = vmatprep.subr.mxu0 0.0
    %405 = vmatpush1.xpose.msra.mxu0 0.0
    %406 = vmatprep.subr.mxu0 0.0
    %407 = vmatpush1.xpose.msra.mxu0 0.0
    %408 = vmatprep.subr.mxu0 0.0
    %409 = vmatpush1.xpose.msra.mxu0 0.0
    %410 = vmatprep.subr.mxu0 0.0
    %411 = vmatpush1.xpose.msra.mxu0 0.0
    %412 = vmatprep.subr.mxu0 0.0
    %413 = vmatpush1.xpose.msra.mxu0 0.0
    %414 = vmatprep.subr.mxu0 0.0
    %415 = vmatpush1.xpose.msra.mxu0 0.0
    %416 = vmatprep.subr.mxu0 0.0
    %417 = vmatpush1.xpose.msra.mxu0 0.0
    %418 = vmatprep.subr.mxu0 0.0
    %419 = vmatpush1.xpose.msra.mxu0 0.0
    %420 = vmatprep.subr.mxu0 0.0
    %421 = vmatpush1.xpose.msra.mxu0 0.0
    %422 = vmatprep.subr.mxu0 0.0
    %423 = vmatpush1.xpose.msra.mxu0 0.0
    %424 = vmatprep.subr.mxu0 0.0
    %425 = vmatpush1.xpose.msra.mxu0 0.0
    %426 = vmatprep.subr.mxu0 0.0
    %427 = vmatpush1.xpose.msra.mxu0 0.0
    %428 = vmatprep.subr.mxu0 0.0
    %429 = vmatpush1.xpose.msra.mxu0 0.0
    %430 = vmatprep.subr.mxu0 0.0
    %431 = vmatpush1.xpose.msra.mxu0 0.0
    %432 = vmatprep.mubr.f32.mxu0 0.0
    %433 = vmatmul.mubr.f32.gmra.mrb[0].mxu0 %v364
    %v434 = vpop.f32.mrb[0].mxu0
    %v435 = vadd.f32 0.0, %v434
    %v436 = vpop.f32.mrb[0].mxu0
    %437 = vdwg.mxu0
    %v438 = vsel %vm215, %v199, 0
    %440 = vmatprep.subr.mxu0 0.0
    %441 = vmatpush1.xpose.msra.mxu0 %v366
    %442 = vmatprep.subr.mxu0 0.0
    %443 = vmatpush1.xpose.msra.mxu0 0.0
    %444 = vmatprep.subr.mxu0 0.0
    %445 = vmatpush1.xpose.msra.mxu0 0.0
    %446 = vmatprep.subr.mxu0 0.0
    %447 = vmatpush1.xpose.msra.mxu0 0.0
    %448 = vmatprep.subr.mxu0 0.0
    %449 = vmatpush1.xpose.msra.mxu0 0.0
    %450 = vmatprep.subr.mxu0 0.0
    %451 = vmatpush1.xpose.msra.mxu0 0.0
    %452 = vmatprep.subr.mxu0 0.0
    %453 = vmatpush1.xpose.msra.mxu0 0.0
    %454 = vmatprep.subr.mxu0 0.0
    %455 = vmatpush1.xpose.msra.mxu0 0.0
    %456 = vmatprep.subr.mxu0 0.0
    %457 = vmatpush1.xpose.msra.mxu0 0.0
    %458 = vmatprep.subr.mxu0 0.0
    %459 = vmatpush1.xpose.msra.mxu0 0.0
    %460 = vmatprep.subr.mxu0 0.0
    %461 = vmatpush1.xpose.msra.mxu0 0.0
    %462 = vmatprep.subr.mxu0 0.0
    %463 = vmatpush1.xpose.msra.mxu0 0.0
    %464 = vmatprep.subr.mxu0 0.0
    %465 = vmatpush1.xpose.msra.mxu0 0.0
    %466 = vmatprep.subr.mxu0 0.0
    %467 = vmatpush1.xpose.msra.mxu0 0.0
    %468 = vmatprep.subr.mxu0 0.0
    %469 = vmatpush1.xpose.msra.mxu0 0.0
    %470 = vmatprep.subr.mxu0 0.0
    %471 = vmatpush1.xpose.msra.mxu0 0.0
    %472 = vmatprep.subr.mxu0 0.0
    %473 = vmatpush1.xpose.msra.mxu0 0.0
    %474 = vmatprep.subr.mxu0 0.0
    %475 = vmatpush1.xpose.msra.mxu0 0.0
    %476 = vmatprep.subr.mxu0 0.0
    %477 = vmatpush1.xpose.msra.mxu0 0.0
    %478 = vmatprep.subr.mxu0 0.0
    %479 = vmatpush1.xpose.msra.mxu0 0.0
    %480 = vmatprep.subr.mxu0 0.0
    %481 = vmatpush1.xpose.msra.mxu0 0.0
    %482 = vmatprep.subr.mxu0 0.0
    %483 = vmatpush1.xpose.msra.mxu0 0.0
    %484 = vmatprep.subr.mxu0 0.0
    %485 = vmatpush1.xpose.msra.mxu0 0.0
    %486 = vmatprep.subr.mxu0 0.0
    %487 = vmatpush1.xpose.msra.mxu0 0.0
    %488 = vmatprep.subr.mxu0 0.0
    %489 = vmatpush1.xpose.msra.mxu0 0.0
    %490 = vmatprep.subr.mxu0 0.0
    %491 = vmatpush1.xpose.msra.mxu0 0.0
    %492 = vmatprep.subr.mxu0 0.0
    %493 = vmatpush1.xpose.msra.mxu0 0.0
    %494 = vmatprep.subr.mxu0 0.0
    %495 = vmatpush1.xpose.msra.mxu0 0.0
    %496 = vmatprep.subr.mxu0 0.0
    %497 = vmatpush1.xpose.msra.mxu0 0.0
    %498 = vmatprep.subr.mxu0 0.0
    %499 = vmatpush1.xpose.msra.mxu0 0.0
    %500 = vmatprep.subr.mxu0 0.0
    %501 = vmatpush1.xpose.msra.mxu0 0.0
    %502 = vmatprep.subr.mxu0 0.0
    %503 = vmatpush1.xpose.msra.mxu0 0.0
    %504 = vmatprep.mubr.f32.mxu0 0.0
    %505 = vmatmul.mubr.f32.gmra.mrb[0].mxu0 %v438
    %v506 = vpop.f32.mrb[0].mxu0
    %v507 = vadd.f32 0.0, %v506
    %v508 = vpop.f32.mrb[0].mxu0
    %509 = vdwg.mxu0
    %510 = vrot.lane.b32.xlu0 %v192, 96
    %v511 = vpop.permute.xlu0 %510
    %v512 = vsel %vm215, %v192, 0
    %v514 = vsel %vm215, %v511, 0
    %516 = vmatprep.subr.mxu0 0.0
    %517 = vmatpush1.xpose.msra.mxu0 %v514
    %518 = vmatprep.subr.mxu0 0.0
    %519 = vmatpush1.xpose.msra.mxu0 0.0
    %520 = vmatprep.subr.mxu0 0.0
    %521 = vmatpush1.xpose.msra.mxu0 0.0
    %522 = vmatprep.subr.mxu0 0.0
    %523 = vmatpush1.xpose.msra.mxu0 0.0
    %524 = vmatprep.subr.mxu0 0.0
    %525 = vmatpush1.xpose.msra.mxu0 0.0
    %526 = vmatprep.subr.mxu0 0.0
    %527 = vmatpush1.xpose.msra.mxu0 0.0
    %528 = vmatprep.subr.mxu0 0.0
    %529 = vmatpush1.xpose.msra.mxu0 0.0
    %530 = vmatprep.subr.mxu0 0.0
    %531 = vmatpush1.xpose.msra.mxu0 0.0
    %532 = vmatprep.subr.mxu0 0.0
    %533 = vmatpush1.xpose.msra.mxu0 0.0
    %534 = vmatprep.subr.mxu0 0.0
    %535 = vmatpush1.xpose.msra.mxu0 0.0
    %536 = vmatprep.subr.mxu0 0.0
    %537 = vmatpush1.xpose.msra.mxu0 0.0
    %538 = vmatprep.subr.mxu0 0.0
    %539 = vmatpush1.xpose.msra.mxu0 0.0
    %540 = vmatprep.subr.mxu0 0.0
    %541 = vmatpush1.xpose.msra.mxu0 0.0
    %542 = vmatprep.subr.mxu0 0.0
    %543 = vmatpush1.xpose.msra.mxu0 0.0
    %544 = vmatprep.subr.mxu0 0.0
    %545 = vmatpush1.xpose.msra.mxu0 0.0
    %546 = vmatprep.subr.mxu0 0.0
    %547 = vmatpush1.xpose.msra.mxu0 0.0
    %548 = vmatprep.subr.mxu0 0.0
    %549 = vmatpush1.xpose.msra.mxu0 0.0
    %550 = vmatprep.subr.mxu0 0.0
    %551 = vmatpush1.xpose.msra.mxu0 0.0
    %552 = vmatprep.subr.mxu0 0.0
    %553 = vmatpush1.xpose.msra.mxu0 0.0
    %554 = vmatprep.subr.mxu0 0.0
    %555 = vmatpush1.xpose.msra.mxu0 0.0
    %556 = vmatprep.subr.mxu0 0.0
    %557 = vmatpush1.xpose.msra.mxu0 0.0
    %558 = vmatprep.subr.mxu0 0.0
    %559 = vmatpush1.xpose.msra.mxu0 0.0
    %560 = vmatprep.subr.mxu0 0.0
    %561 = vmatpush1.xpose.msra.mxu0 0.0
    %562 = vmatprep.subr.mxu0 0.0
    %563 = vmatpush1.xpose.msra.mxu0 0.0
    %564 = vmatprep.subr.mxu0 0.0
    %565 = vmatpush1.xpose.msra.mxu0 0.0
    %566 = vmatprep.subr.mxu0 0.0
    %567 = vmatpush1.xpose.msra.mxu0 0.0
    %568 = vmatprep.subr.mxu0 0.0
    %569 = vmatpush1.xpose.msra.mxu0 0.0
    %570 = vmatprep.subr.mxu0 0.0
    %571 = vmatpush1.xpose.msra.mxu0 0.0
    %572 = vmatprep.subr.mxu0 0.0
    %573 = vmatpush1.xpose.msra.mxu0 0.0
    %574 = vmatprep.subr.mxu0 0.0
    %575 = vmatpush1.xpose.msra.mxu0 0.0
    %576 = vmatprep.subr.mxu0 0.0
    %577 = vmatpush1.xpose.msra.mxu0 0.0
    %578 = vmatprep.subr.mxu0 0.0
    %579 = vmatpush1.xpose.msra.mxu0 0.0
    %580 = vmatprep.mubr.f32.mxu0 0.0
    %581 = vmatmul.mubr.f32.gmra.mrb[0].mxu0 %v512
    %v582 = vpop.f32.mrb[0].mxu0
    %v583 = vadd.f32 0.0, %v582
    %v584 = vpop.f32.mrb[0].mxu0
    %585 = vdwg.mxu0
    %v586 = vsel %vm215, %v202, 0
    %588 = vmatprep.subr.mxu0 0.0
    %589 = vmatpush1.xpose.msra.mxu0 %v514
    %590 = vmatprep.subr.mxu0 0.0
    %591 = vmatpush1.xpose.msra.mxu0 0.0
    %592 = vmatprep.subr.mxu0 0.0
    %593 = vmatpush1.xpose.msra.mxu0 0.0
    %594 = vmatprep.subr.mxu0 0.0
    %595 = vmatpush1.xpose.msra.mxu0 0.0
    %596 = vmatprep.subr.mxu0 0.0
    %597 = vmatpush1.xpose.msra.mxu0 0.0
    %598 = vmatprep.subr.mxu0 0.0
    %599 = vmatpush1.xpose.msra.mxu0 0.0
    %600 = vmatprep.subr.mxu0 0.0
    %601 = vmatpush1.xpose.msra.mxu0 0.0
    %602 = vmatprep.subr.mxu0 0.0
    %603 = vmatpush1.xpose.msra.mxu0 0.0
    %604 = vmatprep.subr.mxu0 0.0
    %605 = vmatpush1.xpose.msra.mxu0 0.0
    %606 = vmatprep.subr.mxu0 0.0
    %607 = vmatpush1.xpose.msra.mxu0 0.0
    %608 = vmatprep.subr.mxu0 0.0
    %609 = vmatpush1.xpose.msra.mxu0 0.0
    %610 = vmatprep.subr.mxu0 0.0
    %611 = vmatpush1.xpose.msra.mxu0 0.0
    %612 = vmatprep.subr.mxu0 0.0
    %613 = vmatpush1.xpose.msra.mxu0 0.0
    %614 = vmatprep.subr.mxu0 0.0
    %615 = vmatpush1.xpose.msra.mxu0 0.0
    %616 = vmatprep.subr.mxu0 0.0
    %617 = vmatpush1.xpose.msra.mxu0 0.0
    %618 = vmatprep.subr.mxu0 0.0
    %619 = vmatpush1.xpose.msra.mxu0 0.0
    %620 = vmatprep.subr.mxu0 0.0
    %621 = vmatpush1.xpose.msra.mxu0 0.0
    %622 = vmatprep.subr.mxu0 0.0
    %623 = vmatpush1.xpose.msra.mxu0 0.0
    %624 = vmatprep.subr.mxu0 0.0
    %625 = vmatpush1.xpose.msra.mxu0 0.0
    %626 = vmatprep.subr.mxu0 0.0
    %627 = vmatpush1.xpose.msra.mxu0 0.0
    %628 = vmatprep.subr.mxu0 0.0
    %629 = vmatpush1.xpose.msra.mxu0 0.0
    %630 = vmatprep.subr.mxu0 0.0
    %631 = vmatpush1.xpose.msra.mxu0 0.0
    %632 = vmatprep.subr.mxu0 0.0
    %633 = vmatpush1.xpose.msra.mxu0 0.0
    %634 = vmatprep.subr.mxu0 0.0
    %635 = vmatpush1.xpose.msra.mxu0 0.0
    %636 = vmatprep.subr.mxu0 0.0
    %637 = vmatpush1.xpose.msra.mxu0 0.0
    %638 = vmatprep.subr.mxu0 0.0
    %639 = vmatpush1.xpose.msra.mxu0 0.0
    %640 = vmatprep.subr.mxu0 0.0
    %641 = vmatpush1.xpose.msra.mxu0 0.0
    %642 = vmatprep.subr.mxu0 0.0
    %643 = vmatpush1.xpose.msra.mxu0 0.0
    %644 = vmatprep.subr.mxu0 0.0
    %645 = vmatpush1.xpose.msra.mxu0 0.0
    %646 = vmatprep.subr.mxu0 0.0
    %647 = vmatpush1.xpose.msra.mxu0 0.0
    %648 = vmatprep.subr.mxu0 0.0
    %649 = vmatpush1.xpose.msra.mxu0 0.0
    %650 = vmatprep.subr.mxu0 0.0
    %651 = vmatpush1.xpose.msra.mxu0 0.0
    %652 = vmatprep.mubr.f32.mxu0 0.0
    %653 = vmatmul.mubr.f32.gmra.mrb[0].mxu0 %v586
    %v654 = vpop.f32.mrb[0].mxu0
    %v655 = vadd.f32 0.0, %v654
    %v656 = vpop.f32.mrb[0].mxu0
    %657 = vdwg.mxu0
    %658 = vrot.lane.b32.xlu0 %v202, 96
    %v659 = vpop.permute.xlu0 %658
    %v660 = vsel %vm215, %v204, 0
    %v662 = vsel %vm215, %v659, 0
    %664 = vmatprep.subr.mxu0 0.0
    %665 = vmatpush1.xpose.msra.mxu0 %v662
    %666 = vmatprep.subr.mxu0 0.0
    %667 = vmatpush1.xpose.msra.mxu0 0.0
    %668 = vmatprep.subr.mxu0 0.0
    %669 = vmatpush1.xpose.msra.mxu0 0.0
    %670 = vmatprep.subr.mxu0 0.0
    %671 = vmatpush1.xpose.msra.mxu0 0.0
    %672 = vmatprep.subr.mxu0 0.0
    %673 = vmatpush1.xpose.msra.mxu0 0.0
    %674 = vmatprep.subr.mxu0 0.0
    %675 = vmatpush1.xpose.msra.mxu0 0.0
    %676 = vmatprep.subr.mxu0 0.0
    %677 = vmatpush1.xpose.msra.mxu0 0.0
    %678 = vmatprep.subr.mxu0 0.0
    %679 = vmatpush1.xpose.msra.mxu0 0.0
    %680 = vmatprep.subr.mxu0 0.0
    %681 = vmatpush1.xpose.msra.mxu0 0.0
    %682 = vmatprep.subr.mxu0 0.0
    %683 = vmatpush1.xpose.msra.mxu0 0.0
    %684 = vmatprep.subr.mxu0 0.0
    %685 = vmatpush1.xpose.msra.mxu0 0.0
    %686 = vmatprep.subr.mxu0 0.0
    %687 = vmatpush1.xpose.msra.mxu0 0.0
    %688 = vmatprep.subr.mxu0 0.0
    %689 = vmatpush1.xpose.msra.mxu0 0.0
    %690 = vmatprep.subr.mxu0 0.0
    %691 = vmatpush1.xpose.msra.mxu0 0.0
    %692 = vmatprep.subr.mxu0 0.0
    %693 = vmatpush1.xpose.msra.mxu0 0.0
    %694 = vmatprep.subr.mxu0 0.0
    %695 = vmatpush1.xpose.msra.mxu0 0.0
    %696 = vmatprep.subr.mxu0 0.0
    %697 = vmatpush1.xpose.msra.mxu0 0.0
    %698 = vmatprep.subr.mxu0 0.0
    %699 = vmatpush1.xpose.msra.mxu0 0.0
    %700 = vmatprep.subr.mxu0 0.0
    %701 = vmatpush1.xpose.msra.mxu0 0.0
    %702 = vmatprep.subr.mxu0 0.0
    %703 = vmatpush1.xpose.msra.mxu0 0.0
    %704 = vmatprep.subr.mxu0 0.0
    %705 = vmatpush1.xpose.msra.mxu0 0.0
    %706 = vmatprep.subr.mxu0 0.0
    %707 = vmatpush1.xpose.msra.mxu0 0.0
    %708 = vmatprep.subr.mxu0 0.0
    %709 = vmatpush1.xpose.msra.mxu0 0.0
    %710 = vmatprep.subr.mxu0 0.0
    %711 = vmatpush1.xpose.msra.mxu0 0.0
    %712 = vmatprep.subr.mxu0 0.0
    %713 = vmatpush1.xpose.msra.mxu0 0.0
    %714 = vmatprep.subr.mxu0 0.0
    %715 = vmatpush1.xpose.msra.mxu0 0.0
    %716 = vmatprep.subr.mxu0 0.0
    %717 = vmatpush1.xpose.msra.mxu0 0.0
    %718 = vmatprep.subr.mxu0 0.0
    %719 = vmatpush1.xpose.msra.mxu0 0.0
    %720 = vmatprep.subr.mxu0 0.0
    %721 = vmatpush1.xpose.msra.mxu0 0.0
    %722 = vmatprep.subr.mxu0 0.0
    %723 = vmatpush1.xpose.msra.mxu0 0.0
    %724 = vmatprep.subr.mxu0 0.0
    %725 = vmatpush1.xpose.msra.mxu0 0.0
    %726 = vmatprep.subr.mxu0 0.0
    %727 = vmatpush1.xpose.msra.mxu0 0.0
    %728 = vmatprep.mubr.f32.mxu0 0.0
    %729 = vmatmul.mubr.f32.gmra.mrb[0].mxu0 %v660
    %v730 = vpop.f32.mrb[0].mxu0
    %v731 = vadd.f32 0.0, %v730
    %v732 = vpop.f32.mrb[0].mxu0
    %733 = vdwg.mxu0
    %v734 = vsel %vm215, %v206, 0
    %736 = vmatprep.subr.mxu0 0.0
    %737 = vmatpush1.xpose.msra.mxu0 %v662
    %738 = vmatprep.subr.mxu0 0.0
    %739 = vmatpush1.xpose.msra.mxu0 0.0
    %740 = vmatprep.subr.mxu0 0.0
    %741 = vmatpush1.xpose.msra.mxu0 0.0
    %742 = vmatprep.subr.mxu0 0.0
    %743 = vmatpush1.xpose.msra.mxu0 0.0
    %744 = vmatprep.subr.mxu0 0.0
    %745 = vmatpush1.xpose.msra.mxu0 0.0
    %746 = vmatprep.subr.mxu0 0.0
    %747 = vmatpush1.xpose.msra.mxu0 0.0
    %748 = vmatprep.subr.mxu0 0.0
    %749 = vmatpush1.xpose.msra.mxu0 0.0
    %750 = vmatprep.subr.mxu0 0.0
    %751 = vmatpush1.xpose.msra.mxu0 0.0
    %752 = vmatprep.subr.mxu0 0.0
    %753 = vmatpush1.xpose.msra.mxu0 0.0
    %754 = vmatprep.subr.mxu0 0.0
    %755 = vmatpush1.xpose.msra.mxu0 0.0
    %756 = vmatprep.subr.mxu0 0.0
    %757 = vmatpush1.xpose.msra.mxu0 0.0
    %758 = vmatprep.subr.mxu0 0.0
    %759 = vmatpush1.xpose.msra.mxu0 0.0
    %760 = vmatprep.subr.mxu0 0.0
    %761 = vmatpush1.xpose.msra.mxu0 0.0
    %762 = vmatprep.subr.mxu0 0.0
    %763 = vmatpush1.xpose.msra.mxu0 0.0
    %764 = vmatprep.subr.mxu0 0.0
    %765 = vmatpush1.xpose.msra.mxu0 0.0
    %766 = vmatprep.subr.mxu0 0.0
    %767 = vmatpush1.xpose.msra.mxu0 0.0
    %768 = vmatprep.subr.mxu0 0.0
    %769 = vmatpush1.xpose.msra.mxu0 0.0
    %770 = vmatprep.subr.mxu0 0.0
    %771 = vmatpush1.xpose.msra.mxu0 0.0
    %772 = vmatprep.subr.mxu0 0.0
    %773 = vmatpush1.xpose.msra.mxu0 0.0
    %774 = vmatprep.subr.mxu0 0.0
    %775 = vmatpush1.xpose.msra.mxu0 0.0
    %776 = vmatprep.subr.mxu0 0.0
    %777 = vmatpush1.xpose.msra.mxu0 0.0
    %778 = vmatprep.subr.mxu0 0.0
    %779 = vmatpush1.xpose.msra.mxu0 0.0
    %780 = vmatprep.subr.mxu0 0.0
    %781 = vmatpush1.xpose.msra.mxu0 0.0
    %782 = vmatprep.subr.mxu0 0.0
    %783 = vmatpush1.xpose.msra.mxu0 0.0
    %784 = vmatprep.subr.mxu0 0.0
    %785 = vmatpush1.xpose.msra.mxu0 0.0
    %786 = vmatprep.subr.mxu0 0.0
    %787 = vmatpush1.xpose.msra.mxu0 0.0
    %788 = vmatprep.subr.mxu0 0.0
    %789 = vmatpush1.xpose.msra.mxu0 0.0
    %790 = vmatprep.subr.mxu0 0.0
    %791 = vmatpush1.xpose.msra.mxu0 0.0
    %792 = vmatprep.subr.mxu0 0.0
    %793 = vmatpush1.xpose.msra.mxu0 0.0
    %794 = vmatprep.subr.mxu0 0.0
    %795 = vmatpush1.xpose.msra.mxu0 0.0
    %796 = vmatprep.subr.mxu0 0.0
    %797 = vmatpush1.xpose.msra.mxu0 0.0
    %798 = vmatprep.subr.mxu0 0.0
    %799 = vmatpush1.xpose.msra.mxu0 0.0
    %800 = vmatprep.mubr.f32.mxu0 0.0
    %801 = vmatmul.mubr.f32.gmra.mrb[0].mxu0 %v734
    %v802 = vpop.f32.mrb[0].mxu0
    %v803 = vadd.f32 0.0, %v802
    %v804 = vpop.f32.mrb[0].mxu0
    %805 = vdwg.mxu0
    %v806 = vlaneseq
    %v807 = vshrl.u32 %v806, 7
    %v808 = vlaneseq
    %v809 = vand.u32 %v808, 127
    %vm810 = vcmp.ge.s32.totalorder %v807, %v809
    %v811 = vsel %vm810, 1, 0
    %vm812 = vcmp.eq.s32.totalorder %v811, 1
    %v813 = vsel %vm812, %v287, -1e+30
    %v814 = vsel %vm812, %v359, -1e+30
    %v815 = vsel %vm812, %v435, -1e+30
    %v816 = vsel %vm812, %v507, -1e+30
    %v817 = vsel %vm812, %v583, -1e+30
    %v818 = vsel %vm812, %v655, -1e+30
    %v819 = vsel %vm812, %v731, -1e+30
    %v820 = vsel %vm812, %v803, -1e+30
    %v821 = vsel %vm215, %v813, -inf
    %822 = vmax.xlane.f32.xlu0 %v821
    %v823 = vpop.xlane.xlu0 %822
    %v824 = vsel %vm215, %v814, -inf
    %825 = vmax.xlane.f32.xlu0 %v824
    %v826 = vpop.xlane.xlu0 %825
    %v827 = vsel %vm215, %v815, -inf
    %828 = vmax.xlane.f32.xlu0 %v827
    %v829 = vpop.xlane.xlu0 %828
    %v830 = vsel %vm215, %v816, -inf
    %831 = vmax.xlane.f32.xlu0 %v830
    %v832 = vpop.xlane.xlu0 %831
    %v833 = vsel %vm215, %v817, -inf
    %834 = vmax.xlane.f32.xlu0 %v833
    %v835 = vpop.xlane.xlu0 %834
    %v836 = vsel %vm215, %v818, -inf
    %837 = vmax.xlane.f32.xlu0 %v836
    %v838 = vpop.xlane.xlu0 %837
    %v839 = vsel %vm215, %v819, -inf
    %840 = vmax.xlane.f32.xlu0 %v839
    %v841 = vpop.xlane.xlu0 %840
    %v842 = vsel %vm215, %v820, -inf
    %843 = vmax.xlane.f32.xlu0 %v842
    %v844 = vpop.xlane.xlu0 %843
    %v845 = vsub.f32 %v813, %v823
    %v846 = vsub.f32 %v814, %v826
    %v847 = vsub.f32 %v815, %v829
    %v848 = vsub.f32 %v816, %v832
    %v849 = vsub.f32 %v817, %v835
    %v850 = vsub.f32 %v818, %v838
    %v851 = vsub.f32 %v819, %v841
    %v852 = vsub.f32 %v820, %v844
    %v853 = vmul.f32 %v845, 1.442695
    %v854 = vpow.pop %v853
    %v855 = vmul.f32 %v846, 1.442695
    %v856 = vpow.pop %v855
    %v857 = vmul.f32 %v847, 1.442695
    %v858 = vpow.pop %v857
    %v859 = vmul.f32 %v848, 1.442695
    %v860 = vpow.pop %v859
    %v861 = vmul.f32 %v849, 1.442695
    %v862 = vpow.pop %v861
    %v863 = vmul.f32 %v850, 1.442695
    %v864 = vpow.pop %v863
    %v865 = vmul.f32 %v851, 1.442695
    %v866 = vpow.pop %v865
    %v867 = vmul.f32 %v852, 1.442695
    %v868 = vpow.pop %v867
    %v869 = vsel %vm215, %v854, 0.0
    %870 = vadd.xlane.f32.xlu0 %v869
    %v871 = vpop.xlane.xlu0 %870
    %v872 = vsel %vm215, %v856, 0.0
    %873 = vadd.xlane.f32.xlu0 %v872
    %v874 = vpop.xlane.xlu0 %873
    %v875 = vsel %vm215, %v858, 0.0
    %876 = vadd.xlane.f32.xlu0 %v875
    %v877 = vpop.xlane.xlu0 %876
    %v878 = vsel %vm215, %v860, 0.0
    %879 = vadd.xlane.f32.xlu0 %v878
    %v880 = vpop.xlane.xlu0 %879
    %v881 = vsel %vm215, %v862, 0.0
    %882 = vadd.xlane.f32.xlu0 %v881
    %v883 = vpop.xlane.xlu0 %882
    %v884 = vsel %vm215, %v864, 0.0
    %885 = vadd.xlane.f32.xlu0 %v884
    %v886 = vpop.xlane.xlu0 %885
    %v887 = vsel %vm215, %v866, 0.0
    %888 = vadd.xlane.f32.xlu0 %v887
    %v889 = vpop.xlane.xlu0 %888
    %v890 = vsel %vm215, %v868, 0.0
    %891 = vadd.xlane.f32.xlu0 %v890
    %v892 = vpop.xlane.xlu0 %891
    %v893 = vrcp.pop %v871
    %v894 = vrcp.pop %v874
    %v895 = vrcp.pop %v877
    %v896 = vrcp.pop %v880
    %v897 = vrcp.pop %v883
    %v898 = vrcp.pop %v886
    %v899 = vrcp.pop %v889
    %v900 = vrcp.pop %v892
    %v901 = vmul.f32 %v854, %v893
    %v902 = vmul.f32 %v856, %v894
    %v903 = vmul.f32 %v858, %v895
    %v904 = vmul.f32 %v860, %v896
    %v905 = vmul.f32 %v862, %v897
    %v906 = vmul.f32 %v864, %v898
    %v907 = vmul.f32 %v866, %v899
    %v908 = vmul.f32 %v868, %v900
    %909 = vrot.lane.b32.xlu0 %v171, 32
    %v910 = vpop.permute.xlu0 %909
    %v913 = vsel %vm215, %v901, 0
    %915 = vmatprep.subr.mxu0 0.0
    %916 = vmatpush1.msra.mxu0 %v910
    %917 = vmatprep.subr.mxu0 0.0
    %918 = vmatpush1.msra.mxu0 0.0
    %919 = vmatprep.subr.mxu0 0.0
    %920 = vmatpush1.msra.mxu0 0.0
    %921 = vmatprep.subr.mxu0 0.0
    %922 = vmatpush1.msra.mxu0 0.0
    %923 = vmatprep.subr.mxu0 0.0
    %924 = vmatpush1.msra.mxu0 0.0
    %925 = vmatprep.subr.mxu0 0.0
    %926 = vmatpush1.msra.mxu0 0.0
    %927 = vmatprep.subr.mxu0 0.0
    %928 = vmatpush1.msra.mxu0 0.0
    %929 = vmatprep.subr.mxu0 0.0
    %930 = vmatpush1.msra.mxu0 0.0
    %931 = vmatprep.subr.mxu0 0.0
    %932 = vmatpush1.msra.mxu0 0.0
    %933 = vmatprep.subr.mxu0 0.0
    %934 = vmatpush1.msra.mxu0 0.0
    %935 = vmatprep.subr.mxu0 0.0
    %936 = vmatpush1.msra.mxu0 0.0
    %937 = vmatprep.subr.mxu0 0.0
    %938 = vmatpush1.msra.mxu0 0.0
    %939 = vmatprep.subr.mxu0 0.0
    %940 = vmatpush1.msra.mxu0 0.0
    %941 = vmatprep.subr.mxu0 0.0
    %942 = vmatpush1.msra.mxu0 0.0
    %943 = vmatprep.subr.mxu0 0.0
    %944 = vmatpush1.msra.mxu0 0.0
    %945 = vmatprep.subr.mxu0 0.0
    %946 = vmatpush1.msra.mxu0 0.0
    %947 = vmatprep.subr.mxu0 0.0
    %948 = vmatpush1.msra.mxu0 0.0
    %949 = vmatprep.subr.mxu0 0.0
    %950 = vmatpush1.msra.mxu0 0.0
    %951 = vmatprep.subr.mxu0 0.0
    %952 = vmatpush1.msra.mxu0 0.0
    %953 = vmatprep.subr.mxu0 0.0
    %954 = vmatpush1.msra.mxu0 0.0
    %955 = vmatprep.subr.mxu0 0.0
    %956 = vmatpush1.msra.mxu0 0.0
    %957 = vmatprep.subr.mxu0 0.0
    %958 = vmatpush1.msra.mxu0 0.0
    %959 = vmatprep.subr.mxu0 0.0
    %960 = vmatpush1.msra.mxu0 0.0
    %961 = vmatprep.subr.mxu0 0.0
    %962 = vmatpush1.msra.mxu0 0.0
    %963 = vmatprep.subr.mxu0 0.0
    %964 = vmatpush1.msra.mxu0 0.0
    %965 = vmatprep.subr.mxu0 0.0
    %966 = vmatpush1.msra.mxu0 0.0
    %967 = vmatprep.subr.mxu0 0.0
    %968 = vmatpush1.msra.mxu0 0.0
    %969 = vmatprep.subr.mxu0 0.0
    %970 = vmatpush1.msra.mxu0 0.0
    %971 = vmatprep.subr.mxu0 0.0
    %972 = vmatpush1.msra.mxu0 0.0
    %973 = vmatprep.subr.mxu0 0.0
    %974 = vmatpush1.msra.mxu0 0.0
    %975 = vmatprep.subr.mxu0 0.0
    %976 = vmatpush1.msra.mxu0 0.0
    %977 = vmatprep.subr.mxu0 0.0
    %978 = vmatpush1.msra.mxu0 0.0
    %979 = vmatprep.mubr.f32.mxu0 0.0
    %980 = vmatmul.mubr.f32.gmra.mrb[0].mxu0 %v913
    %v981 = vpop.f32.mrb[0].mxu0
    %v982 = vadd.f32 0.0, %v981
    %v983 = vpop.f32.mrb[0].mxu0
    %984 = vdwg.mxu0
    %v986 = vsel %vm215, %v902, 0
    %988 = vmatprep.subr.mxu0 0.0
    %989 = vmatpush1.msra.mxu0 %v910
    %990 = vmatprep.subr.mxu0 0.0
    %991 = vmatpush1.msra.mxu0 0.0
    %992 = vmatprep.subr.mxu0 0.0
    %993 = vmatpush1.msra.mxu0 0.0
    %994 = vmatprep.subr.mxu0 0.0
    %995 = vmatpush1.msra.mxu0 0.0
    %996 = vmatprep.subr.mxu0 0.0
    %997 = vmatpush1.msra.mxu0 0.0
    %998 = vmatprep.subr.mxu0 0.0
    %999 = vmatpush1.msra.mxu0 0.0
    %1000 = vmatprep.subr.mxu0 0.0
    %1001 = vmatpush1.msra.mxu0 0.0
    %1002 = vmatprep.subr.mxu0 0.0
    %1003 = vmatpush1.msra.mxu0 0.0
    %1004 = vmatprep.subr.mxu0 0.0
    %1005 = vmatpush1.msra.mxu0 0.0
    %1006 = vmatprep.subr.mxu0 0.0
    %1007 = vmatpush1.msra.mxu0 0.0
    %1008 = vmatprep.subr.mxu0 0.0
    %1009 = vmatpush1.msra.mxu0 0.0
    %1010 = vmatprep.subr.mxu0 0.0
    %1011 = vmatpush1.msra.mxu0 0.0
    %1012 = vmatprep.subr.mxu0 0.0
    %1013 = vmatpush1.msra.mxu0 0.0
    %1014 = vmatprep.subr.mxu0 0.0
    %1015 = vmatpush1.msra.mxu0 0.0
    %1016 = vmatprep.subr.mxu0 0.0
    %1017 = vmatpush1.msra.mxu0 0.0
    %1018 = vmatprep.subr.mxu0 0.0
    %1019 = vmatpush1.msra.mxu0 0.0
    %1020 = vmatprep.subr.mxu0 0.0
    %1021 = vmatpush1.msra.mxu0 0.0
    %1022 = vmatprep.subr.mxu0 0.0
    %1023 = vmatpush1.msra.mxu0 0.0
    %1024 = vmatprep.subr.mxu0 0.0
    %1025 = vmatpush1.msra.mxu0 0.0
    %1026 = vmatprep.subr.mxu0 0.0
    %1027 = vmatpush1.msra.mxu0 0.0
    %1028 = vmatprep.subr.mxu0 0.0
    %1029 = vmatpush1.msra.mxu0 0.0
    %1030 = vmatprep.subr.mxu0 0.0
    %1031 = vmatpush1.msra.mxu0 0.0
    %1032 = vmatprep.subr.mxu0 0.0
    %1033 = vmatpush1.msra.mxu0 0.0
    %1034 = vmatprep.subr.mxu0 0.0
    %1035 = vmatpush1.msra.mxu0 0.0
    %1036 = vmatprep.subr.mxu0 0.0
    %1037 = vmatpush1.msra.mxu0 0.0
    %1038 = vmatprep.subr.mxu0 0.0
    %1039 = vmatpush1.msra.mxu0 0.0
    %1040 = vmatprep.subr.mxu0 0.0
    %1041 = vmatpush1.msra.mxu0 0.0
    %1042 = vmatprep.subr.mxu0 0.0
    %1043 = vmatpush1.msra.mxu0 0.0
    %1044 = vmatprep.subr.mxu0 0.0
    %1045 = vmatpush1.msra.mxu0 0.0
    %1046 = vmatprep.subr.mxu0 0.0
    %1047 = vmatpush1.msra.mxu0 0.0
    %1048 = vmatprep.subr.mxu0 0.0
    %1049 = vmatpush1.msra.mxu0 0.0
    %1050 = vmatprep.subr.mxu0 0.0
    %1051 = vmatpush1.msra.mxu0 0.0
    %1052 = vmatprep.mubr.f32.mxu0 0.0
    %1053 = vmatmul.mubr.f32.gmra.mrb[0].mxu0 %v986
    %v1054 = vpop.f32.mrb[0].mxu0
    %v1055 = vadd.f32 0.0, %v1054
    %v1056 = vpop.f32.mrb[0].mxu0
    %1057 = vdwg.mxu0
    %1058 = vrot.lane.b32.xlu0 %v209, 32
    %v1059 = vpop.permute.xlu0 %1058
    %v1062 = vsel %vm215, %v903, 0
    %1064 = vmatprep.subr.mxu0 0.0
    %1065 = vmatpush1.msra.mxu0 %v1059
    %1066 = vmatprep.subr.mxu0 0.0
    %1067 = vmatpush1.msra.mxu0 0.0
    %1068 = vmatprep.subr.mxu0 0.0
    %1069 = vmatpush1.msra.mxu0 0.0
    %1070 = vmatprep.subr.mxu0 0.0
    %1071 = vmatpush1.msra.mxu0 0.0
    %1072 = vmatprep.subr.mxu0 0.0
    %1073 = vmatpush1.msra.mxu0 0.0
    %1074 = vmatprep.subr.mxu0 0.0
    %1075 = vmatpush1.msra.mxu0 0.0
    %1076 = vmatprep.subr.mxu0 0.0
    %1077 = vmatpush1.msra.mxu0 0.0
    %1078 = vmatprep.subr.mxu0 0.0
    %1079 = vmatpush1.msra.mxu0 0.0
    %1080 = vmatprep.subr.mxu0 0.0
    %1081 = vmatpush1.msra.mxu0 0.0
    %1082 = vmatprep.subr.mxu0 0.0
    %1083 = vmatpush1.msra.mxu0 0.0
    %1084 = vmatprep.subr.mxu0 0.0
    %1085 = vmatpush1.msra.mxu0 0.0
    %1086 = vmatprep.subr.mxu0 0.0
    %1087 = vmatpush1.msra.mxu0 0.0
    %1088 = vmatprep.subr.mxu0 0.0
    %1089 = vmatpush1.msra.mxu0 0.0
    %1090 = vmatprep.subr.mxu0 0.0
    %1091 = vmatpush1.msra.mxu0 0.0
    %1092 = vmatprep.subr.mxu0 0.0
    %1093 = vmatpush1.msra.mxu0 0.0
    %1094 = vmatprep.subr.mxu0 0.0
    %1095 = vmatpush1.msra.mxu0 0.0
    %1096 = vmatprep.subr.mxu0 0.0
    %1097 = vmatpush1.msra.mxu0 0.0
    %1098 = vmatprep.subr.mxu0 0.0
    %1099 = vmatpush1.msra.mxu0 0.0
    %1100 = vmatprep.subr.mxu0 0.0
    %1101 = vmatpush1.msra.mxu0 0.0
    %1102 = vmatprep.subr.mxu0 0.0
    %1103 = vmatpush1.msra.mxu0 0.0
    %1104 = vmatprep.subr.mxu0 0.0
    %1105 = vmatpush1.msra.mxu0 0.0
    %1106 = vmatprep.subr.mxu0 0.0
    %1107 = vmatpush1.msra.mxu0 0.0
    %1108 = vmatprep.subr.mxu0 0.0
    %1109 = vmatpush1.msra.mxu0 0.0
    %1110 = vmatprep.subr.mxu0 0.0
    %1111 = vmatpush1.msra.mxu0 0.0
    %1112 = vmatprep.subr.mxu0 0.0
    %1113 = vmatpush1.msra.mxu0 0.0
    %1114 = vmatprep.subr.mxu0 0.0
    %1115 = vmatpush1.msra.mxu0 0.0
    %1116 = vmatprep.subr.mxu0 0.0
    %1117 = vmatpush1.msra.mxu0 0.0
    %1118 = vmatprep.subr.mxu0 0.0
    %1119 = vmatpush1.msra.mxu0 0.0
    %1120 = vmatprep.subr.mxu0 0.0
    %1121 = vmatpush1.msra.mxu0 0.0
    %1122 = vmatprep.subr.mxu0 0.0
    %1123 = vmatpush1.msra.mxu0 0.0
    %1124 = vmatprep.subr.mxu0 0.0
    %1125 = vmatpush1.msra.mxu0 0.0
    %1126 = vmatprep.subr.mxu0 0.0
    %1127 = vmatpush1.msra.mxu0 0.0
    %1128 = vmatprep.mubr.f32.mxu0 0.0
    %1129 = vmatmul.mubr.f32.gmra.mrb[0].mxu0 %v1062
    %v1130 = vpop.f32.mrb[0].mxu0
    %v1131 = vadd.f32 0.0, %v1130
    %v1132 = vpop.f32.mrb[0].mxu0
    %1133 = vdwg.mxu0
    %v1135 = vsel %vm215, %v904, 0
    %1137 = vmatprep.subr.mxu0 0.0
    %1138 = vmatpush1.msra.mxu0 %v1059
    %1139 = vmatprep.subr.mxu0 0.0
    %1140 = vmatpush1.msra.mxu0 0.0
    %1141 = vmatprep.subr.mxu0 0.0
    %1142 = vmatpush1.msra.mxu0 0.0
    %1143 = vmatprep.subr.mxu0 0.0
    %1144 = vmatpush1.msra.mxu0 0.0
    %1145 = vmatprep.subr.mxu0 0.0
    %1146 = vmatpush1.msra.mxu0 0.0
    %1147 = vmatprep.subr.mxu0 0.0
    %1148 = vmatpush1.msra.mxu0 0.0
    %1149 = vmatprep.subr.mxu0 0.0
    %1150 = vmatpush1.msra.mxu0 0.0
    %1151 = vmatprep.subr.mxu0 0.0
    %1152 = vmatpush1.msra.mxu0 0.0
    %1153 = vmatprep.subr.mxu0 0.0
    %1154 = vmatpush1.msra.mxu0 0.0
    %1155 = vmatprep.subr.mxu0 0.0
    %1156 = vmatpush1.msra.mxu0 0.0
    %1157 = vmatprep.subr.mxu0 0.0
    %1158 = vmatpush1.msra.mxu0 0.0
    %1159 = vmatprep.subr.mxu0 0.0
    %1160 = vmatpush1.msra.mxu0 0.0
    %1161 = vmatprep.subr.mxu0 0.0
    %1162 = vmatpush1.msra.mxu0 0.0
    %1163 = vmatprep.subr.mxu0 0.0
    %1164 = vmatpush1.msra.mxu0 0.0
    %1165 = vmatprep.subr.mxu0 0.0
    %1166 = vmatpush1.msra.mxu0 0.0
    %1167 = vmatprep.subr.mxu0 0.0
    %1168 = vmatpush1.msra.mxu0 0.0
    %1169 = vmatprep.subr.mxu0 0.0
    %1170 = vmatpush1.msra.mxu0 0.0
    %1171 = vmatprep.subr.mxu0 0.0
    %1172 = vmatpush1.msra.mxu0 0.0
    %1173 = vmatprep.subr.mxu0 0.0
    %1174 = vmatpush1.msra.mxu0 0.0
    %1175 = vmatprep.subr.mxu0 0.0
    %1176 = vmatpush1.msra.mxu0 0.0
    %1177 = vmatprep.subr.mxu0 0.0
    %1178 = vmatpush1.msra.mxu0 0.0
    %1179 = vmatprep.subr.mxu0 0.0
    %1180 = vmatpush1.msra.mxu0 0.0
    %1181 = vmatprep.subr.mxu0 0.0
    %1182 = vmatpush1.msra.mxu0 0.0
    %1183 = vmatprep.subr.mxu0 0.0
    %1184 = vmatpush1.msra.mxu0 0.0
    %1185 = vmatprep.subr.mxu0 0.0
    %1186 = vmatpush1.msra.mxu0 0.0
    %1187 = vmatprep.subr.mxu0 0.0
    %1188 = vmatpush1.msra.mxu0 0.0
    %1189 = vmatprep.subr.mxu0 0.0
    %1190 = vmatpush1.msra.mxu0 0.0
    %1191 = vmatprep.subr.mxu0 0.0
    %1192 = vmatpush1.msra.mxu0 0.0
    %1193 = vmatprep.subr.mxu0 0.0
    %1194 = vmatpush1.msra.mxu0 0.0
    %1195 = vmatprep.subr.mxu0 0.0
    %1196 = vmatpush1.msra.mxu0 0.0
    %1197 = vmatprep.subr.mxu0 0.0
    %1198 = vmatpush1.msra.mxu0 0.0
    %1199 = vmatprep.subr.mxu0 0.0
    %1200 = vmatpush1.msra.mxu0 0.0
    %1201 = vmatprep.mubr.f32.mxu0 0.0
    %1202 = vmatmul.mubr.f32.gmra.mrb[0].mxu0 %v1135
    %v1203 = vpop.f32.mrb[0].mxu0
    %v1204 = vadd.f32 0.0, %v1203
    %v1205 = vpop.f32.mrb[0].mxu0
    %1206 = vdwg.mxu0
    %1207 = vrot.lane.b32.xlu0 %v176, 32
    %v1208 = vpop.permute.xlu0 %1207
    %v1211 = vsel %vm215, %v905, 0
    %1213 = vmatprep.subr.mxu0 0.0
    %1214 = vmatpush1.msra.mxu0 %v1208
    %1215 = vmatprep.subr.mxu0 0.0
    %1216 = vmatpush1.msra.mxu0 0.0
    %1217 = vmatprep.subr.mxu0 0.0
    %1218 = vmatpush1.msra.mxu0 0.0
    %1219 = vmatprep.subr.mxu0 0.0
    %1220 = vmatpush1.msra.mxu0 0.0
    %1221 = vmatprep.subr.mxu0 0.0
    %1222 = vmatpush1.msra.mxu0 0.0
    %1223 = vmatprep.subr.mxu0 0.0
    %1224 = vmatpush1.msra.mxu0 0.0
    %1225 = vmatprep.subr.mxu0 0.0
    %1226 = vmatpush1.msra.mxu0 0.0
    %1227 = vmatprep.subr.mxu0 0.0
    %1228 = vmatpush1.msra.mxu0 0.0
    %1229 = vmatprep.subr.mxu0 0.0
    %1230 = vmatpush1.msra.mxu0 0.0
    %1231 = vmatprep.subr.mxu0 0.0
    %1232 = vmatpush1.msra.mxu0 0.0
    %1233 = vmatprep.subr.mxu0 0.0
    %1234 = vmatpush1.msra.mxu0 0.0
    %1235 = vmatprep.subr.mxu0 0.0
    %1236 = vmatpush1.msra.mxu0 0.0
    %1237 = vmatprep.subr.mxu0 0.0
    %1238 = vmatpush1.msra.mxu0 0.0
    %1239 = vmatprep.subr.mxu0 0.0
    %1240 = vmatpush1.msra.mxu0 0.0
    %1241 = vmatprep.subr.mxu0 0.0
    %1242 = vmatpush1.msra.mxu0 0.0
    %1243 = vmatprep.subr.mxu0 0.0
    %1244 = vmatpush1.msra.mxu0 0.0
    %1245 = vmatprep.subr.mxu0 0.0
    %1246 = vmatpush1.msra.mxu0 0.0
    %1247 = vmatprep.subr.mxu0 0.0
    %1248 = vmatpush1.msra.mxu0 0.0
    %1249 = vmatprep.subr.mxu0 0.0
    %1250 = vmatpush1.msra.mxu0 0.0
    %1251 = vmatprep.subr.mxu0 0.0
    %1252 = vmatpush1.msra.mxu0 0.0
    %1253 = vmatprep.subr.mxu0 0.0
    %1254 = vmatpush1.msra.mxu0 0.0
    %1255 = vmatprep.subr.mxu0 0.0
    %1256 = vmatpush1.msra.mxu0 0.0
    %1257 = vmatprep.subr.mxu0 0.0
    %1258 = vmatpush1.msra.mxu0 0.0
    %1259 = vmatprep.subr.mxu0 0.0
    %1260 = vmatpush1.msra.mxu0 0.0
    %1261 = vmatprep.subr.mxu0 0.0
    %1262 = vmatpush1.msra.mxu0 0.0
    %1263 = vmatprep.subr.mxu0 0.0
    %1264 = vmatpush1.msra.mxu0 0.0
    %1265 = vmatprep.subr.mxu0 0.0
    %1266 = vmatpush1.msra.mxu0 0.0
    %1267 = vmatprep.subr.mxu0 0.0
    %1268 = vmatpush1.msra.mxu0 0.0
    %1269 = vmatprep.subr.mxu0 0.0
    %1270 = vmatpush1.msra.mxu0 0.0
    %1271 = vmatprep.subr.mxu0 0.0
    %1272 = vmatpush1.msra.mxu0 0.0
    %1273 = vmatprep.subr.mxu0 0.0
    %1274 = vmatpush1.msra.mxu0 0.0
    %1275 = vmatprep.subr.mxu0 0.0
    %1276 = vmatpush1.msra.mxu0 0.0
    %1277 = vmatprep.mubr.f32.mxu0 0.0
    %1278 = vmatmul.mubr.f32.gmra.mrb[0].mxu0 %v1211
    %v1279 = vpop.f32.mrb[0].mxu0
    %v1280 = vadd.f32 0.0, %v1279
    %v1281 = vpop.f32.mrb[0].mxu0
    %1282 = vdwg.mxu0
    %v1284 = vsel %vm215, %v906, 0
    %1286 = vmatprep.subr.mxu0 0.0
    %1287 = vmatpush1.msra.mxu0 %v1208
    %1288 = vmatprep.subr.mxu0 0.0
    %1289 = vmatpush1.msra.mxu0 0.0
    %1290 = vmatprep.subr.mxu0 0.0
    %1291 = vmatpush1.msra.mxu0 0.0
    %1292 = vmatprep.subr.mxu0 0.0
    %1293 = vmatpush1.msra.mxu0 0.0
    %1294 = vmatprep.subr.mxu0 0.0
    %1295 = vmatpush1.msra.mxu0 0.0
    %1296 = vmatprep.subr.mxu0 0.0
    %1297 = vmatpush1.msra.mxu0 0.0
    %1298 = vmatprep.subr.mxu0 0.0
    %1299 = vmatpush1.msra.mxu0 0.0
    %1300 = vmatprep.subr.mxu0 0.0
    %1301 = vmatpush1.msra.mxu0 0.0
    %1302 = vmatprep.subr.mxu0 0.0
    %1303 = vmatpush1.msra.mxu0 0.0
    %1304 = vmatprep.subr.mxu0 0.0
    %1305 = vmatpush1.msra.mxu0 0.0
    %1306 = vmatprep.subr.mxu0 0.0
    %1307 = vmatpush1.msra.mxu0 0.0
    %1308 = vmatprep.subr.mxu0 0.0
    %1309 = vmatpush1.msra.mxu0 0.0
    %1310 = vmatprep.subr.mxu0 0.0
    %1311 = vmatpush1.msra.mxu0 0.0
    %1312 = vmatprep.subr.mxu0 0.0
    %1313 = vmatpush1.msra.mxu0 0.0
    %1314 = vmatprep.subr.mxu0 0.0
    %1315 = vmatpush1.msra.mxu0 0.0
    %1316 = vmatprep.subr.mxu0 0.0
    %1317 = vmatpush1.msra.mxu0 0.0
    %1318 = vmatprep.subr.mxu0 0.0
    %1319 = vmatpush1.msra.mxu0 0.0
    %1320 = vmatprep.subr.mxu0 0.0
    %1321 = vmatpush1.msra.mxu0 0.0
    %1322 = vmatprep.subr.mxu0 0.0
    %1323 = vmatpush1.msra.mxu0 0.0
    %1324 = vmatprep.subr.mxu0 0.0
    %1325 = vmatpush1.msra.mxu0 0.0
    %1326 = vmatprep.subr.mxu0 0.0
    %1327 = vmatpush1.msra.mxu0 0.0
    %1328 = vmatprep.subr.mxu0 0.0
    %1329 = vmatpush1.msra.mxu0 0.0
    %1330 = vmatprep.subr.mxu0 0.0
    %1331 = vmatpush1.msra.mxu0 0.0
    %1332 = vmatprep.subr.mxu0 0.0
    %1333 = vmatpush1.msra.mxu0 0.0
    %1334 = vmatprep.subr.mxu0 0.0
    %1335 = vmatpush1.msra.mxu0 0.0
    %1336 = vmatprep.subr.mxu0 0.0
    %1337 = vmatpush1.msra.mxu0 0.0
    %1338 = vmatprep.subr.mxu0 0.0
    %1339 = vmatpush1.msra.mxu0 0.0
    %1340 = vmatprep.subr.mxu0 0.0
    %1341 = vmatpush1.msra.mxu0 0.0
    %1342 = vmatprep.subr.mxu0 0.0
    %1343 = vmatpush1.msra.mxu0 0.0
    %1344 = vmatprep.subr.mxu0 0.0
    %1345 = vmatpush1.msra.mxu0 0.0
    %1346 = vmatprep.subr.mxu0 0.0
    %1347 = vmatpush1.msra.mxu0 0.0
    %1348 = vmatprep.subr.mxu0 0.0
    %1349 = vmatpush1.msra.mxu0 0.0
    %1350 = vmatprep.mubr.f32.mxu0 0.0
    %1351 = vmatmul.mubr.f32.gmra.mrb[0].mxu0 %v1284
    %v1352 = vpop.f32.mrb[0].mxu0
    %v1353 = vadd.f32 0.0, %v1352
    %v1354 = vpop.f32.mrb[0].mxu0
    %1355 = vdwg.mxu0
    %1356 = vrot.lane.b32.xlu0 %v212, 32
    %v1357 = vpop.permute.xlu0 %1356
    %v1360 = vsel %vm215, %v907, 0
    %1362 = vmatprep.subr.mxu0 0.0
    %1363 = vmatpush1.msra.mxu0 %v1357
    %1364 = vmatprep.subr.mxu0 0.0
    %1365 = vmatpush1.msra.mxu0 0.0
    %1366 = vmatprep.subr.mxu0 0.0
    %1367 = vmatpush1.msra.mxu0 0.0
    %1368 = vmatprep.subr.mxu0 0.0
    %1369 = vmatpush1.msra.mxu0 0.0
    %1370 = vmatprep.subr.mxu0 0.0
    %1371 = vmatpush1.msra.mxu0 0.0
    %1372 = vmatprep.subr.mxu0 0.0
    %1373 = vmatpush1.msra.mxu0 0.0
    %1374 = vmatprep.subr.mxu0 0.0
    %1375 = vmatpush1.msra.mxu0 0.0
    %1376 = vmatprep.subr.mxu0 0.0
    %1377 = vmatpush1.msra.mxu0 0.0
    %1378 = vmatprep.subr.mxu0 0.0
    %1379 = vmatpush1.msra.mxu0 0.0
    %1380 = vmatprep.subr.mxu0 0.0
    %1381 = vmatpush1.msra.mxu0 0.0
    %1382 = vmatprep.subr.mxu0 0.0
    %1383 = vmatpush1.msra.mxu0 0.0
    %1384 = vmatprep.subr.mxu0 0.0
    %1385 = vmatpush1.msra.mxu0 0.0
    %1386 = vmatprep.subr.mxu0 0.0
    %1387 = vmatpush1.msra.mxu0 0.0
    %1388 = vmatprep.subr.mxu0 0.0
    %1389 = vmatpush1.msra.mxu0 0.0
    %1390 = vmatprep.subr.mxu0 0.0
    %1391 = vmatpush1.msra.mxu0 0.0
    %1392 = vmatprep.subr.mxu0 0.0
    %1393 = vmatpush1.msra.mxu0 0.0
    %1394 = vmatprep.subr.mxu0 0.0
    %1395 = vmatpush1.msra.mxu0 0.0
    %1396 = vmatprep.subr.mxu0 0.0
    %1397 = vmatpush1.msra.mxu0 0.0
    %1398 = vmatprep.subr.mxu0 0.0
    %1399 = vmatpush1.msra.mxu0 0.0
    %1400 = vmatprep.subr.mxu0 0.0
    %1401 = vmatpush1.msra.mxu0 0.0
    %1402 = vmatprep.subr.mxu0 0.0
    %1403 = vmatpush1.msra.mxu0 0.0
    %1404 = vmatprep.subr.mxu0 0.0
    %1405 = vmatpush1.msra.mxu0 0.0
    %1406 = vmatprep.subr.mxu0 0.0
    %1407 = vmatpush1.msra.mxu0 0.0
    %1408 = vmatprep.subr.mxu0 0.0
    %1409 = vmatpush1.msra.mxu0 0.0
    %1410 = vmatprep.subr.mxu0 0.0
    %1411 = vmatpush1.msra.mxu0 0.0
    %1412 = vmatprep.subr.mxu0 0.0
    %1413 = vmatpush1.msra.mxu0 0.0
    %1414 = vmatprep.subr.mxu0 0.0
    %1415 = vmatpush1.msra.mxu0 0.0
    %1416 = vmatprep.subr.mxu0 0.0
    %1417 = vmatpush1.msra.mxu0 0.0
    %1418 = vmatprep.subr.mxu0 0.0
    %1419 = vmatpush1.msra.mxu0 0.0
    %1420 = vmatprep.subr.mxu0 0.0
    %1421 = vmatpush1.msra.mxu0 0.0
    %1422 = vmatprep.subr.mxu0 0.0
    %1423 = vmatpush1.msra.mxu0 0.0
    %1424 = vmatprep.subr.mxu0 0.0
    %1425 = vmatpush1.msra.mxu0 0.0
    %1426 = vmatprep.mubr.f32.mxu0 0.0
    %1427 = vmatmul.mubr.f32.gmra.mrb[0].mxu0 %v1360
    %v1428 = vpop.f32.mrb[0].mxu0
    %v1429 = vadd.f32 0.0, %v1428
    %v1430 = vpop.f32.mrb[0].mxu0
    %1431 = vdwg.mxu0
    %v1433 = vsel %vm215, %v908, 0
    %1435 = vmatprep.subr.mxu0 0.0
    %1436 = vmatpush1.msra.mxu0 %v1357
    %1437 = vmatprep.subr.mxu0 0.0
    %1438 = vmatpush1.msra.mxu0 0.0
    %1439 = vmatprep.subr.mxu0 0.0
    %1440 = vmatpush1.msra.mxu0 0.0
    %1441 = vmatprep.subr.mxu0 0.0
    %1442 = vmatpush1.msra.mxu0 0.0
    %1443 = vmatprep.subr.mxu0 0.0
    %1444 = vmatpush1.msra.mxu0 0.0
    %1445 = vmatprep.subr.mxu0 0.0
    %1446 = vmatpush1.msra.mxu0 0.0
    %1447 = vmatprep.subr.mxu0 0.0
    %1448 = vmatpush1.msra.mxu0 0.0
    %1449 = vmatprep.subr.mxu0 0.0
    %1450 = vmatpush1.msra.mxu0 0.0
    %1451 = vmatprep.subr.mxu0 0.0
    %1452 = vmatpush1.msra.mxu0 0.0
    %1453 = vmatprep.subr.mxu0 0.0
    %1454 = vmatpush1.msra.mxu0 0.0
    %1455 = vmatprep.subr.mxu0 0.0
    %1456 = vmatpush1.msra.mxu0 0.0
    %1457 = vmatprep.subr.mxu0 0.0
    %1458 = vmatpush1.msra.mxu0 0.0
    %1459 = vmatprep.subr.mxu0 0.0
    %1460 = vmatpush1.msra.mxu0 0.0
    %1461 = vmatprep.subr.mxu0 0.0
    %1462 = vmatpush1.msra.mxu0 0.0
    %1463 = vmatprep.subr.mxu0 0.0
    %1464 = vmatpush1.msra.mxu0 0.0
    %1465 = vmatprep.subr.mxu0 0.0
    %1466 = vmatpush1.msra.mxu0 0.0
    %1467 = vmatprep.subr.mxu0 0.0
    %1468 = vmatpush1.msra.mxu0 0.0
    %1469 = vmatprep.subr.mxu0 0.0
    %1470 = vmatpush1.msra.mxu0 0.0
    %1471 = vmatprep.subr.mxu0 0.0
    %1472 = vmatpush1.msra.mxu0 0.0
    %1473 = vmatprep.subr.mxu0 0.0
    %1474 = vmatpush1.msra.mxu0 0.0
    %1475 = vmatprep.subr.mxu0 0.0
    %1476 = vmatpush1.msra.mxu0 0.0
    %1477 = vmatprep.subr.mxu0 0.0
    %1478 = vmatpush1.msra.mxu0 0.0
    %1479 = vmatprep.subr.mxu0 0.0
    %1480 = vmatpush1.msra.mxu0 0.0
    %1481 = vmatprep.subr.mxu0 0.0
    %1482 = vmatpush1.msra.mxu0 0.0
    %1483 = vmatprep.subr.mxu0 0.0
    %1484 = vmatpush1.msra.mxu0 0.0
    %1485 = vmatprep.subr.mxu0 0.0
    %1486 = vmatpush1.msra.mxu0 0.0
    %1487 = vmatprep.subr.mxu0 0.0
    %1488 = vmatpush1.msra.mxu0 0.0
    %1489 = vmatprep.subr.mxu0 0.0
    %1490 = vmatpush1.msra.mxu0 0.0
    %1491 = vmatprep.subr.mxu0 0.0
    %1492 = vmatpush1.msra.mxu0 0.0
    %1493 = vmatprep.subr.mxu0 0.0
    %1494 = vmatpush1.msra.mxu0 0.0
    %1495 = vmatprep.subr.mxu0 0.0
    %1496 = vmatpush1.msra.mxu0 0.0
    %1497 = vmatprep.subr.mxu0 0.0
    %1498 = vmatpush1.msra.mxu0 0.0
    %1499 = vmatprep.mubr.f32.mxu0 0.0
    %1500 = vmatmul.mubr.f32.gmra.mrb[0].mxu0 %v1433
    %v1501 = vpop.f32.mrb[0].mxu0
    %v1502 = vadd.f32 0.0, %v1501
    %v1503 = vpop.f32.mrb[0].mxu0
    %1504 = vdwg.mxu0
    %1506 = vrot.lane.b32.xlu0 %v1055, 8
    %v1507 = vpop.permute.xlu0 %1506
    %1510 = vrot.lane.b32.xlu0 %v1131, 16
    %v1511 = vpop.permute.xlu0 %1510
    %1514 = vrot.lane.b32.xlu0 %v1204, 24
    %v1515 = vpop.permute.xlu0 %1514
    %v1517 = vsel %vm215, %v982, %v1507
    %vm1518 = vcmask 130048
    %v1519 = vsel %vm1518, %v1517, %v1511
    %vm1520 = vcmask 195584
    %v1521 = vsel %vm1520, %v1519, %v1515
    %1523 = vrot.lane.b32.xlu0 %v1353, 8
    %v1524 = vpop.permute.xlu0 %1523
    %1527 = vrot.lane.b32.xlu0 %v1429, 16
    %v1528 = vpop.permute.xlu0 %1527
    %1531 = vrot.lane.b32.xlu0 %v1502, 24
    %v1532 = vpop.permute.xlu0 %1531
    %v1534 = vsel %vm215, %v1280, %v1524
    %v1535 = vsel %vm1518, %v1534, %v1528
    %v1536 = vsel %vm1520, %v1535, %v1532
    %v1537 = vadd.f32 %v45, %v1521
    %v1538 = vadd.f32 %v46, %v1536
    %v1539 = vld [vmem:[%s3 + $0x2] sm:$0x1]
    %v1540 = vld [vmem:[%s3 + $0x3] sm:$0x1]
    %v1541 = vsel %vm49, %v1537, 0.0
    %1542 = vadd.xlane.f32.xlu0 %v1541
    %v1543 = vpop.xlane.xlu0 %1542
    %v1544 = vsel %vm49, %v1538, 0.0
    %1545 = vadd.xlane.f32.xlu0 %v1544
    %v1546 = vpop.xlane.xlu0 %1545
    %v1547 = vmul.f32 %v1543, %v56
    %v1548 = vmul.f32 %v1546, %v56
    %v1549 = vsub.f32 %v1537, %v1547
    %v1550 = vsub.f32 %v1538, %v1548
    %v1551 = vmul.f32 %v1549, %v1549
    %v1552 = vmul.f32 %v1550, %v1550
    %v1553 = vsel %vm49, %v1551, 0.0
    %1554 = vadd.xlane.f32.xlu0 %v1553
    %v1555 = vpop.xlane.xlu0 %1554
    %v1556 = vsel %vm49, %v1552, 0.0
    %1557 = vadd.xlane.f32.xlu0 %v1556
    %v1558 = vpop.xlane.xlu0 %1557
    %v1559 = vmul.f32 %v1555, %v56
    %v1560 = vmul.f32 %v1558, %v56
    %v1561 = vadd.f32 %v1559, 1e-05
    %v1562 = vadd.f32 %v1560, 1e-05
    %v1563 = vrsqrt.pop %v1561
    %v1564 = vrsqrt.pop %v1562
    %v1565 = vmul.f32 %v1549, %v1563
    %v1566 = vmul.f32 %v1550, %v1564
    %v1567 = vlaneseq
    %v1568 = vshrl.u32 %v1567, 7
    %v1569 = vsub.s32 0, %v1568
    %v1570 = vrot.slane %v1539, %v1569
    %v1571 = vmul.f32 %v1565, %v1570
    %v1572 = vmul.f32 %v1566, %v1570
    %v1573 = vlaneseq
    %v1574 = vshrl.u32 %v1573, 7
    %v1575 = vsub.s32 0, %v1574
    %v1576 = vrot.slane %v1540, %v1575
    %v1577 = vadd.f32 %v1571, %v1576
    %v1578 = vadd.f32 %v1572, %v1576
    %v1579 = vld [vmem:[%s4] sm:$0xff]
    %v1580 = vld [vmem:[%s4 + $0x8] sm:$0xff]
    %v1581 = vld [vmem:[%s4 + $0x10] sm:$0xff]
    %v1582 = vld [vmem:[%s4 + $0x18] sm:$0xff]
    %v1583 = vld [vmem:[%s4 + $0x20] sm:$0x1]
    %v1584 = vlaneseq
    %v1585 = vshrl.u32 %v1584, 7
    %v1586 = vsub.s32 0, %v1585
    %v1587 = vrot.slane %v1583, %v1586
    %v1589 = vsel %vm49, %v1577, 0
    %v1592 = vsel %vm49, %v1578, 0
    %1594 = vmatprep.subr.mxu0 0.0
    %1595 = vmatpush1.msra.mxu0 %v1579
    %1596 = vmatprep.subr.mxu0 0.0
    %1597 = vmatpush1.msra.mxu0 %v1580
    %1598 = vmatprep.subr.mxu0 0.0
    %1599 = vmatpush1.msra.mxu0 %v1581
    %1600 = vmatprep.subr.mxu0 0.0
    %1601 = vmatpush1.msra.mxu0 %v1582
    %1602 = vmatprep.subr.mxu0 0.0
    %1603 = vmatpush1.msra.mxu0 0.0
    %1604 = vmatprep.subr.mxu0 0.0
    %1605 = vmatpush1.msra.mxu0 0.0
    %1606 = vmatprep.subr.mxu0 0.0
    %1607 = vmatpush1.msra.mxu0 0.0
    %1608 = vmatprep.subr.mxu0 0.0
    %1609 = vmatpush1.msra.mxu0 0.0
    %1610 = vmatprep.subr.mxu0 0.0
    %1611 = vmatpush1.msra.mxu0 0.0
    %1612 = vmatprep.subr.mxu0 0.0
    %1613 = vmatpush1.msra.mxu0 0.0
    %1614 = vmatprep.subr.mxu0 0.0
    %1615 = vmatpush1.msra.mxu0 0.0
    %1616 = vmatprep.subr.mxu0 0.0
    %1617 = vmatpush1.msra.mxu0 0.0
    %1618 = vmatprep.subr.mxu0 0.0
    %1619 = vmatpush1.msra.mxu0 0.0
    %1620 = vmatprep.subr.mxu0 0.0
    %1621 = vmatpush1.msra.mxu0 0.0
    %1622 = vmatprep.subr.mxu0 0.0
    %1623 = vmatpush1.msra.mxu0 0.0
    %1624 = vmatprep.subr.mxu0 0.0
    %1625 = vmatpush1.msra.mxu0 0.0
    %1626 = vmatprep.subr.mxu0 0.0
    %1627 = vmatpush1.msra.mxu0 0.0
    %1628 = vmatprep.subr.mxu0 0.0
    %1629 = vmatpush1.msra.mxu0 0.0
    %1630 = vmatprep.subr.mxu0 0.0
    %1631 = vmatpush1.msra.mxu0 0.0
    %1632 = vmatprep.subr.mxu0 0.0
    %1633 = vmatpush1.msra.mxu0 0.0
    %1634 = vmatprep.subr.mxu0 0.0
    %1635 = vmatpush1.msra.mxu0 0.0
    %1636 = vmatprep.subr.mxu0 0.0
    %1637 = vmatpush1.msra.mxu0 0.0
    %1638 = vmatprep.subr.mxu0 0.0
    %1639 = vmatpush1.msra.mxu0 0.0
    %1640 = vmatprep.subr.mxu0 0.0
    %1641 = vmatpush1.msra.mxu0 0.0
    %1642 = vmatprep.subr.mxu0 0.0
    %1643 = vmatpush1.msra.mxu0 0.0
    %1644 = vmatprep.subr.mxu0 0.0
    %1645 = vmatpush1.msra.mxu0 0.0
    %1646 = vmatprep.subr.mxu0 0.0
    %1647 = vmatpush1.msra.mxu0 0.0
    %1648 = vmatprep.subr.mxu0 0.0
    %1649 = vmatpush1.msra.mxu0 0.0
    %1650 = vmatprep.subr.mxu0 0.0
    %1651 = vmatpush1.msra.mxu0 0.0
    %1652 = vmatprep.subr.mxu0 0.0
    %1653 = vmatpush1.msra.mxu0 0.0
    %1654 = vmatprep.subr.mxu0 0.0
    %1655 = vmatpush1.msra.mxu0 0.0
    %1656 = vmatprep.subr.mxu0 0.0
    %1657 = vmatpush1.msra.mxu0 0.0
    %1658 = vmatprep.mubr.f32.mxu0 0.0
    %1659 = vmatmul.mubr.f32.gmra.mrb[0].mxu0 %v1589
    %v1660 = vpop.f32.mrb[0].mxu0
    %v1661 = vadd.f32 %v1587, %v1660
    %v1662 = vpop.f32.mrb[0].mxu0
    %1663 = vmatprep.mubr.f32.mxu0 0.0
    %1664 = vmatmul.mubr.f32.gmra.mrb[0].mxu0 %v1592
    %v1665 = vpop.f32.mrb[0].mxu0
    %v1666 = vadd.f32 %v1587, %v1665
    %v1667 = vpop.f32.mrb[0].mxu0
    %1668 = vdwg.mxu0
    %v1669 = vld [vmem:[#allocation3] sm:$0xff]
    %v1670 = vld [vmem:[#allocation3 + $0x8] sm:$0xff]
    %v1671 = vld [vmem:[#allocation3 + $0x10] sm:$0xff]
    %v1672 = vld [vmem:[#allocation3 + $0x18] sm:$0xff]
    %v1673 = vld [vmem:[#allocation3 + $0x20] sm:$0xff]
    %v1674 = vld [vmem:[#allocation3 + $0x28] sm:$0xff]
    %v1675 = vld [vmem:[#allocation3 + $0x30] sm:$0xff]
    %v1676 = vld [vmem:[#allocation3 + $0x38] sm:$0xff]
    %v1677 = vld [vmem:[#allocation3 + $0x40] sm:$0xff]
    %v1678 = vld [vmem:[#allocation3 + $0x48] sm:$0xff]
    %v1679 = vld [vmem:[#allocation3 + $0x50] sm:$0xff]
    %v1680 = vld [vmem:[#allocation3 + $0x58] sm:$0xff]
    %v1681 = vld [vmem:[#allocation3 + $0x60] sm:$0xff]
    %v1682 = vld [vmem:[#allocation3 + $0x68] sm:$0xff]
    %v1683 = vld [vmem:[#allocation3 + $0x70] sm:$0xff]
    %v1684 = vld [vmem:[#allocation3 + $0x78] sm:$0xff]
    %v1685 = vld [vmem:[#allocation3 + $0x80] sm:$0xff]
    %v1686 = vld [vmem:[#allocation3 + $0x88] sm:$0xff]
    %v1687 = vld [vmem:[#allocation3 + $0x90] sm:$0xff]
    %v1688 = vld [vmem:[#allocation3 + $0x98] sm:$0xff]
    %v1689 = vld [vmem:[#allocation3 + $0xa0] sm:$0xff]
    %v1690 = vld [vmem:[#allocation3 + $0xa8] sm:$0xff]
    %v1691 = vld [vmem:[#allocation3 + $0xb0] sm:$0xff]
    %v1692 = vld [vmem:[#allocation3 + $0xb8] sm:$0xff]
    %v1693 = vld [vmem:[#allocation3 + $0xc0] sm:$0xff]
    %v1694 = vld [vmem:[#allocation3 + $0xc8] sm:$0xff]
    %v1695 = vld [vmem:[#allocation3 + $0xd0] sm:$0xff]
    %v1696 = vld [vmem:[#allocation3 + $0xd8] sm:$0xff]
    %v1697 = vld [vmem:[#allocation3 + $0xe0] sm:$0xff]
    %v1698 = vld [vmem:[#allocation3 + $0xe8] sm:$0xff]
    %v1699 = vld [vmem:[#allocation3 + $0xf0] sm:$0xff]
    %v1700 = vld [vmem:[#allocation3 + $0xf8] sm:$0xff]
    %s1701 = scalar_lea.vmem [#allocation3], 256
    %v1702 = vld [vmem:[%s1701] ss:$8 sm:$0x3]
    %v1704 = vlaneseq
    %v1705 = vshrl.u32 %v1704, 7
    %v1706 = vsub.s32 0, %v1705
    %v1707 = vrot.slane %v1702, %v1706
    %v1708 = vlaneseq
    %v1709 = vshrl.u32 %v1708, 7
    %v1710 = vsub.s32 1, %v1709
    %v1711 = vrot.slane %v1702, %v1710
    %1714 = vmatprep.subr.mxu0 %v1670
    %1715 = vmatpush1.msra.mxu0 %v1669
    %1716 = vmatprep.subr.mxu0 %v1672
    %1717 = vmatpush1.msra.mxu0 %v1671
    %1718 = vmatprep.subr.mxu0 %v1674
    %1719 = vmatpush1.msra.mxu0 %v1673
    %1720 = vmatprep.subr.mxu0 %v1676
    %1721 = vmatpush1.msra.mxu0 %v1675
    %1722 = vmatprep.subr.mxu0 %v1678
    %1723 = vmatpush1.msra.mxu0 %v1677
    %1724 = vmatprep.subr.mxu0 %v1680
    %1725 = vmatpush1.msra.mxu0 %v1679
    %1726 = vmatprep.subr.mxu0 %v1682
    %1727 = vmatpush1.msra.mxu0 %v1681
    %1728 = vmatprep.subr.mxu0 %v1684
    %1729 = vmatpush1.msra.mxu0 %v1683
    %1730 = vmatprep.subr.mxu0 %v1686
    %1731 = vmatpush1.msra.mxu0 %v1685
    %1732 = vmatprep.subr.mxu0 %v1688
    %1733 = vmatpush1.msra.mxu0 %v1687
    %1734 = vmatprep.subr.mxu0 %v1690
    %1735 = vmatpush1.msra.mxu0 %v1689
    %1736 = vmatprep.subr.mxu0 %v1692
    %1737 = vmatpush1.msra.mxu0 %v1691
    %1738 = vmatprep.subr.mxu0 %v1694
    %1739 = vmatpush1.msra.mxu0 %v1693
    %1740 = vmatprep.subr.mxu0 %v1696
    %1741 = vmatpush1.msra.mxu0 %v1695
    %1742 = vmatprep.subr.mxu0 %v1698
    %1743 = vmatpush1.msra.mxu0 %v1697
    %1744 = vmatprep.subr.mxu0 %v1700
    %1745 = vmatpush1.msra.mxu0 %v1699
    %1746 = vmatprep.subr.mxu0 0.0
    %1747 = vmatpush1.msra.mxu0 0.0
    %1748 = vmatprep.subr.mxu0 0.0
    %1749 = vmatpush1.msra.mxu0 0.0
    %1750 = vmatprep.subr.mxu0 0.0
    %1751 = vmatpush1.msra.mxu0 0.0
    %1752 = vmatprep.subr.mxu0 0.0
    %1753 = vmatpush1.msra.mxu0 0.0
    %1754 = vmatprep.subr.mxu0 0.0
    %1755 = vmatpush1.msra.mxu0 0.0
    %1756 = vmatprep.subr.mxu0 0.0
    %1757 = vmatpush1.msra.mxu0 0.0
    %1758 = vmatprep.subr.mxu0 0.0
    %1759 = vmatpush1.msra.mxu0 0.0
    %1760 = vmatprep.subr.mxu0 0.0
    %1761 = vmatpush1.msra.mxu0 0.0
    %1762 = vmatprep.subr.mxu0 0.0
    %1763 = vmatpush1.msra.mxu0 0.0
    %1764 = vmatprep.subr.mxu0 0.0
    %1765 = vmatpush1.msra.mxu0 0.0
    %1766 = vmatprep.subr.mxu0 0.0
    %1767 = vmatpush1.msra.mxu0 0.0
    %1768 = vmatprep.subr.mxu0 0.0
    %1769 = vmatpush1.msra.mxu0 0.0
    %1770 = vmatprep.subr.mxu0 0.0
    %1771 = vmatpush1.msra.mxu0 0.0
    %1772 = vmatprep.subr.mxu0 0.0
    %1773 = vmatpush1.msra.mxu0 0.0
    %1774 = vmatprep.subr.mxu0 0.0
    %1775 = vmatpush1.msra.mxu0 0.0
    %1776 = vmatprep.subr.mxu0 0.0
    %1777 = vmatpush1.msra.mxu0 0.0
    %1778 = vmatprep.mubr.f32.mxu0 0.0
    %1779 = vmatmul.mubr.f32.gmra.mrb[0].mxu0 %v1661
    %v1780 = vpop.f32.mrb[0].mxu0
    %v1781 = vadd.f32 %v1707, %v1780
    %v1782 = vpop.f32.mrb[0].mxu0
    %v1783 = vadd.f32 %v1711, %v1782
    %1784 = vmatprep.mubr.f32.mxu0 0.0
    %1785 = vmatmul.mubr.f32.gmra.mrb[0].mxu0 %v1666
    %v1786 = vpop.f32.mrb[0].mxu0
    %v1787 = vadd.f32 %v1707, %v1786
    %v1788 = vpop.f32.mrb[0].mxu0
    %v1789 = vadd.f32 %v1711, %v1788
    %1790 = vdwg.mxu0
    %s1791 = sld [smem:[#allocation2]]
    %v1792 = vstv %s1791
    %v1793 = vmul.f32 %v1792, %v1781
    %v1794 = vmul.f32 %v1792, %v1787
    %v1795 = vxor.u32 %v1793, 2147483648
    %v1796 = vxor.u32 %v1794, 2147483648
    %v1797 = vmul.f32 %v1795, 1.442695
    %v1798 = vpow.pop %v1797
    %v1799 = vmul.f32 %v1796, 1.442695
    %v1800 = vpow.pop %v1799
    %v1801 = vadd.f32 %v1798, 1.0
    %v1802 = vadd.f32 %v1800, 1.0
    %v1803 = vrcp.pop %v1801
    %v1804 = vmul.f32 1.0, %v1803
    %v1805 = vrcp.pop %v1802
    %v1806 = vmul.f32 1.0, %v1805
    %v1807 = vmul.f32 %v1781, %v1804
    %v1808 = vmul.f32 %v1787, %v1806
    %v1809 = vmul.f32 %v1807, %v1783
    %v1810 = vmul.f32 %v1808, %v1789
    %v1811 = vld [vmem:[%s6] sm:$0xff]
    %v1812 = vld [vmem:[%s6 + $0x8] sm:$0xff]
    %v1813 = vld [vmem:[%s6 + $0x10] sm:$0xff]
    %v1814 = vld [vmem:[%s6 + $0x18] sm:$0xff]
    %v1815 = vld [vmem:[%s6 + $0x20] sm:$0xff]
    %v1816 = vld [vmem:[%s6 + $0x28] sm:$0xff]
    %v1817 = vld [vmem:[%s6 + $0x30] sm:$0xff]
    %v1818 = vld [vmem:[%s6 + $0x38] sm:$0xff]
    %v1819 = vld [vmem:[%s6 + $0x40] sm:$0xff]
    %v1820 = vld [vmem:[%s6 + $0x48] sm:$0xff]
    %v1821 = vld [vmem:[%s6 + $0x50] sm:$0xff]
    %v1822 = vld [vmem:[%s6 + $0x58] sm:$0xff]
    %v1823 = vld [vmem:[%s6 + $0x60] sm:$0xff]
    %v1824 = vld [vmem:[%s6 + $0x68] sm:$0xff]
    %v1825 = vld [vmem:[%s6 + $0x70] sm:$0xff]
    %v1826 = vld [vmem:[%s6 + $0x78] sm:$0xff]
    %v1827 = vld [vmem:[%s6 + $0x80] sm:$0x1]
    %v1828 = vlaneseq
    %v1829 = vshrl.u32 %v1828, 7
    %v1830 = vsub.s32 0, %v1829
    %v1831 = vrot.slane %v1827, %v1830
    %1832 = vmatprep.subr.mxu0 0.0
    %1833 = vmatpush1.msra.mxu0 %v1811
    %1834 = vmatprep.subr.mxu0 0.0
    %1835 = vmatpush1.msra.mxu0 %v1812
    %1836 = vmatprep.subr.mxu0 0.0
    %1837 = vmatpush1.msra.mxu0 %v1813
    %1838 = vmatprep.subr.mxu0 0.0
    %1839 = vmatpush1.msra.mxu0 %v1814
    %1840 = vmatprep.subr.mxu0 0.0
    %1841 = vmatpush1.msra.mxu0 %v1815
    %1842 = vmatprep.subr.mxu0 0.0
    %1843 = vmatpush1.msra.mxu0 %v1816
    %1844 = vmatprep.subr.mxu0 0.0
    %1845 = vmatpush1.msra.mxu0 %v1817
    %1846 = vmatprep.subr.mxu0 0.0
    %1847 = vmatpush1.msra.mxu0 %v1818
    %1848 = vmatprep.subr.mxu0 0.0
    %1849 = vmatpush1.msra.mxu0 %v1819
    %1850 = vmatprep.subr.mxu0 0.0
    %1851 = vmatpush1.msra.mxu0 %v1820
    %1852 = vmatprep.subr.mxu0 0.0
    %1853 = vmatpush1.msra.mxu0 %v1821
    %1854 = vmatprep.subr.mxu0 0.0
    %1855 = vmatpush1.msra.mxu0 %v1822
    %1856 = vmatprep.subr.mxu0 0.0
    %1857 = vmatpush1.msra.mxu0 %v1823
    %1858 = vmatprep.subr.mxu0 0.0
    %1859 = vmatpush1.msra.mxu0 %v1824
    %1860 = vmatprep.subr.mxu0 0.0
    %1861 = vmatpush1.msra.mxu0 %v1825
    %1862 = vmatprep.subr.mxu0 0.0
    %1863 = vmatpush1.msra.mxu0 %v1826
    %1864 = vmatprep.subr.mxu0 0.0
    %1865 = vmatpush1.msra.mxu0 0.0
    %1866 = vmatprep.subr.mxu0 0.0
    %1867 = vmatpush1.msra.mxu0 0.0
    %1868 = vmatprep.subr.mxu0 0.0
    %1869 = vmatpush1.msra.mxu0 0.0
    %1870 = vmatprep.subr.mxu0 0.0
    %1871 = vmatpush1.msra.mxu0 0.0
    %1872 = vmatprep.subr.mxu0 0.0
    %1873 = vmatpush1.msra.mxu0 0.0
    %1874 = vmatprep.subr.mxu0 0.0
    %1875 = vmatpush1.msra.mxu0 0.0
    %1876 = vmatprep.subr.mxu0 0.0
    %1877 = vmatpush1.msra.mxu0 0.0
    %1878 = vmatprep.subr.mxu0 0.0
    %1879 = vmatpush1.msra.mxu0 0.0
    %1880 = vmatprep.subr.mxu0 0.0
    %1881 = vmatpush1.msra.mxu0 0.0
    %1882 = vmatprep.subr.mxu0 0.0
    %1883 = vmatpush1.msra.mxu0 0.0
    %1884 = vmatprep.subr.mxu0 0.0
    %1885 = vmatpush1.msra.mxu0 0.0
    %1886 = vmatprep.subr.mxu0 0.0
    %1887 = vmatpush1.msra.mxu0 0.0
    %1888 = vmatprep.subr.mxu0 0.0
    %1889 = vmatpush1.msra.mxu0 0.0
    %1890 = vmatprep.subr.mxu0 0.0
    %1891 = vmatpush1.msra.mxu0 0.0
    %1892 = vmatprep.subr.mxu0 0.0
    %1893 = vmatpush1.msra.mxu0 0.0
    %1894 = vmatprep.subr.mxu0 0.0
    %1895 = vmatpush1.msra.mxu0 0.0
    %1896 = vmatprep.mubr.f32.mxu0 0.0
    %1897 = vmatmul.mubr.f32.gmra.mrb[0].mxu0 %v1809
    %v1898 = vpop.f32.mrb[0].mxu0
    %v1899 = vadd.f32 %v1831, %v1898
    %v1900 = vpop.f32.mrb[0].mxu0
    %1901 = vmatprep.mubr.f32.mxu0 0.0
    %1902 = vmatmul.mubr.f32.gmra.mrb[0].mxu0 %v1810
    %v1903 = vpop.f32.mrb[0].mxu0
    %v1904 = vadd.f32 %v1831, %v1903
    %v1905 = vpop.f32.mrb[0].mxu0
    %1906 = vdwg.mxu0
    %v1907 = vadd.f32 %v1537, %v1899
    %v1908 = vadd.f32 %v1538, %v1904
    %1909 = vst.msk [vmem:[#allocation6] sm:$0xff] %vm49, %v1907
    %1910 = vst.msk [vmem:[#allocation6 + $0x8] sm:$0xff] %vm49, %v1908
    // Predicated region
    $region38: #{tpu_custom_call.1} parent=1 // pred_check
      _
    $region39: #{tpu_custom_call.1} parent=1 // pred_check_branch
      %1912 = sbr.rel (0) target = $region41
    $region40: #{tpu_custom_call.1} parent=1 // pred_region
      %s1914 = ssub.s32 256, 256
      %1915 = vsyncadd [#allocation5], %s1914
      %s1916 = sshll.u32 [#allocation6], 4
      %s1917 = int_to_ptr.vmem [resolvable:$true] %s1916
      %1922 = dma.vmem_to_hbm [thread:$0]  %s1917, 256, %s8, [#allocation5], 128, 128, 8
    $region41: #{tpu_custom_call.1} parent=1 // pred_fallthru
      _
    // Predicated region
    $region42: #{tpu_custom_call.1} parent=1 // pred_check
      _
    $region43: #{tpu_custom_call.1} parent=1 // pred_check_branch
      %1924 = sbr.rel (0) target = $region45
    $region44: #{tpu_custom_call.1} parent=1 // pred_region
      %1925 = dma.done [#allocation5], 256
    $region45: #{tpu_custom_call.1} parent=1 // pred_fallthru
      _
    %1926 = vsyncpa [#allocation4], 1
    %1927 = vsyncpa [#allocation5], 1

</llo_original>
